<compile_context>
chip_gen: v6e
topology: v6e:2x2x1
jax: 0.10.0
libtpu: 0.0.40
codegen_flags: <defaults>
</compile_context>

<pallas_src>
import functools

import jax
import jax.numpy as jnp
from jax.experimental import pallas as pl
from jax.experimental.pallas import tpu as pltpu

LANE = 128
SUBLANE = 8


def _round_up(x, m):
    return (x + m - 1) // m * m


# ----------------------------- Pallas kernel ------------------------------ #
def _emoca_mlp_kernel(feat_ref,
                      w1_ref, s1_ref,
                      w2_ref, s2_ref,
                      w3_ref, s3_ref,
                      w4_ref, s4_ref,
                      wo_ref, bo_ref,
                      out_ref):
    """One batch tile of the fused 5-matmul MLP.

    w*_ref: bf16 weights with eval-mode BN scale folded into the columns.
    s*_ref: (1, H) f32 fused shift = (bias - running_mean) * scale + beta.
    bo_ref: (1, OUT_PAD) f32 output bias (zero-padded to a 128-lane width).
    All matmuls accumulate in f32 (preferred_element_type).
    """
    def layer(x_bf16, w_ref, shift_ref):
        y = jnp.dot(x_bf16, w_ref[...], preferred_element_type=jnp.float32)
        y = y + shift_ref[...]                 # Linear bias + BN shift (eval)
        y = jnp.maximum(y, 0.2 * y)            # LeakyReLU(0.2), single VALU max
        return y.astype(jnp.bfloat16)          # next matmul's MXU input

    x = feat_ref[...]                          # already bf16 (streamed as bf16)
    x = layer(x, w1_ref, s1_ref)               # fc1 + bn1 + lrelu
    x = layer(x, w2_ref, s2_ref)               # fc2 + bn2 + lrelu
    x = layer(x, w3_ref, s3_ref)               # fc3 + bn3 + lrelu
    x = layer(x, w4_ref, s4_ref)               # fc4 + bn4 + lrelu
    out = jnp.dot(x, wo_ref[...], preferred_element_type=jnp.float32)
    out_ref[...] = out + bo_ref[...]           # final Linear (lane-dense 128)


# ------------------------ one-time weight preparation ---------------------- #
def prepare_emoca_params(params, *, eps=1e-5):
    """Fold eval-mode BN into bf16 weight columns, pad fc1 K and output N to
    128 lanes. Call ONCE; the result is reused across forward calls so the
    per-call path does no weight rewriting."""
    in_size, hidden = params["w1"].shape
    out_size = params["wo"].shape[1]
    assert hidden % LANE == 0, "hidden size must be a multiple of 128"
    k_pad = _round_up(in_size, LANE)
    out_pad = _round_up(out_size, LANE)

    def fuse(i):
        w, b = params[f"w{i}"], params[f"b{i}"]
        g, be = params[f"g{i}"], params[f"be{i}"]
        m, v = params[f"m{i}"], params[f"v{i}"]
        s = g / jnp.sqrt(v + eps)
        w_folded = (w * s[None, :]).astype(jnp.bfloat16)        # BN scale -> W
        shift = ((b - m) * s + be).reshape(1, hidden).astype(jnp.float32)
        return w_folded, shift

    w1, s1 = fuse(1)
    w1 = jnp.pad(w1, ((0, k_pad - in_size), (0, 0)))             # aligned K
    w2, s2 = fuse(2)
    w3, s3 = fuse(3)
    w4, s4 = fuse(4)
    wo = jnp.pad(params["wo"].astype(jnp.bfloat16),
                 ((0, 0), (0, out_pad - out_size)))
    bo = jnp.pad(params["bo"].astype(jnp.float32),
                 (0, out_pad - out_size)).reshape(1, out_pad)
    return (w1, s1, w2, s2, w3, s3, w4, s4, wo, bo)


# ------------------------------ jitted forward ----------------------------- #
@functools.partial(jax.jit, static_argnames=("batch_tile", "single_buffer"))
def emoca_recognition_forward(emoca_features, prepared, *,
                              batch_tile=512, single_buffer=True):
    """Fused MLP via Pallas. Returns 'expression' = logits[:, :7]."""
    B, in_size = emoca_features.shape
    w1, s1, w2, s2, w3, s3, w4, s4, wo, bo = prepared
    k_pad, hidden = w1.shape
    out_pad = wo.shape[1]

    # ---- batch tiling: >=2 grid steps when B > 8 (megacore on v7x), tile
    # right-sized to avoid near-full-tile padding waste, rounded to sublane.
    nb = max(2 if B > SUBLANE else 1, pl.cdiv(B, batch_tile))
    tb = _round_up(pl.cdiv(B, nb), SUBLANE)
    nb = pl.cdiv(B, tb)
    b_pad = nb * tb

    # Stream features in bf16 (the kernel consumes bf16 anyway): halves the
    # only per-step input DMA and its double-buffer VMEM.
    feat = jnp.pad(emoca_features.astype(jnp.bfloat16),
                   ((0, b_pad - B), (0, k_pad - in_size)))

    weight_args = (w1, s1, w2, s2, w3, s3, w4, s4, wo, bo)

    def resident(a):
        # Whole array, same block index every grid step -> fetched once,
        # stays VMEM-resident. Single-buffered so it is not duplicated.
        if single_buffer:
            return pl.BlockSpec(a.shape, lambda i: (0, 0),
                                pipeline_mode=pl.Buffered(1))
        return pl.BlockSpec(a.shape, lambda i: (0, 0))

    # ---- explicit scoped-VMEM budget -------------------------------------
    weight_bytes = sum(int(a.size) * a.dtype.itemsize for a in weight_args)
    weight_bytes *= 1 if single_buffer else 2          # buffering multiplier
    tile_bytes = 2 * tb * k_pad * 2 + 2 * tb * out_pad * 4   # feat/out dbl-buf
    act_bytes = 4 * tb * hidden * 4                            # f32 act headroom
    vmem_limit = weight_bytes + tile_bytes + act_bytes + (8 << 20)
    vmem_limit = int(min(max(vmem_limit, 32 << 20), 100 << 20))

    grid_spec = pltpu.PrefetchScalarGridSpec(
        num_scalar_prefetch=0,
        grid=(nb,),
        in_specs=[pl.BlockSpec((tb, k_pad), lambda i: (i, 0))]
                 + [resident(a) for a in weight_args],
        out_specs=pl.BlockSpec((tb, out_pad), lambda i: (i, 0)),
    )

    logits = pl.pallas_call(
        _emoca_mlp_kernel,
        out_shape=jax.ShapeDtypeStruct((b_pad, out_pad), jnp.float32),
        grid_spec=grid_spec,
        compiler_params=pltpu.CompilerParams(
            dimension_semantics=("parallel",),     # megacore-shardable on v7x
            vmem_limit_bytes=vmem_limit),
    )(feat, *weight_args)

    expression = logits[:B, :7]
    # arousal = logits[:B, 8]; valence = logits[:B, 9]   (computed, not returned)
    return expression


# ------------------------------- reference --------------------------------- #
def reference_forward(emoca_features, params):
    def layer(x, w, b, g, be, m, v, eps=1e-5):
        y = x @ w + b
        y = (y - m) / jnp.sqrt(v + eps) * g + be
        return jnp.where(y > 0, y, 0.2 * y)

    x = emoca_features.astype(jnp.float32)
    for i in (1, 2, 3, 4):
        x = layer(x, params[f"w{i}"], params[f"b{i}"], params[f"g{i}"],
                  params[f"be{i}"], params[f"m{i}"], params[f"v{i}"])
    logits = x @ params["wo"] + params["bo"]
    return logits[:, :7]


# --------------------------------- main ------------------------------------ #
if __name__ == "__main__":
    # Small, module-consistent shapes (module defaults: 334 -> 2048 x4 -> 10).
    B = 8
    INPUT_SIZE = 48
    HIDDEN = 256
    OUT = 10

    key = jax.random.PRNGKey(0)

    def linear(k, fan_in, fan_out):
        kw, kb = jax.random.split(k)
        lim = 1.0 / jnp.sqrt(fan_in)
        w = jax.random.uniform(kw, (fan_in, fan_out), jnp.float32, -lim, lim)
        b = jax.random.uniform(kb, (fan_out,), jnp.float32, -lim, lim)
        return w, b

    def bn(k, n):
        k1, k2, k3, k4 = jax.random.split(k, 4)
        gamma = 1.0 + 0.1 * jax.random.normal(k1, (n,), jnp.float32)
        beta = 0.1 * jax.random.normal(k2, (n,), jnp.float32)
        mean = 0.05 * jax.random.normal(k3, (n,), jnp.float32)
        var = 1.0 + 0.1 * jax.random.uniform(k4, (n,), jnp.float32)
        return gamma, beta, mean, var

    keys = jax.random.split(key, 16)
    params = {}
    params["w1"], params["b1"] = linear(keys[0], INPUT_SIZE, HIDDEN)
    params["g1"], params["be1"], params["m1"], params["v1"] = bn(keys[1], HIDDEN)
    params["w2"], params["b2"] = linear(keys[2], HIDDEN, HIDDEN)
    params["g2"], params["be2"], params["m2"], params["v2"] = bn(keys[3], HIDDEN)
    params["w3"], params["b3"] = linear(keys[4], HIDDEN, HIDDEN)
    params["g3"], params["be3"], params["m3"], params["v3"] = bn(keys[5], HIDDEN)
    params["w4"], params["b4"] = linear(keys[6], HIDDEN, HIDDEN)
    params["g4"], params["be4"], params["m4"], params["v4"] = bn(keys[7], HIDDEN)
    params["wo"], params["bo"] = linear(keys[8], HIDDEN, OUT)

    # --- build emoca_feature dict the way the module consumes it (glue) ---
    #   {key: [tensor(B,), ...]}  ->  stack(dim=1) per key -> cat(dim=1)
    n_exp, n_pose = 32, 16                     # 32 + 16 == INPUT_SIZE
    kf = jax.random.split(keys[9], n_exp + n_pose)
    emoca_feature = {
        "exp":  [jax.random.normal(kf[i], (B,), jnp.float32) for i in range(n_exp)],
        "pose": [jax.random.normal(kf[n_exp + i], (B,), jnp.float32) for i in range(n_pose)],
    }
    emoca_features_list = [jnp.stack(emoca_feature[k], axis=1) for k in emoca_feature]
    emoca_features = jnp.concatenate(emoca_features_list, axis=1).astype(jnp.float32)
    assert emoca_features.shape == (B, INPUT_SIZE)

    # unused first argument `x` of forward (only used for .device in torch)
    x_unused = jax.random.normal(keys[10], (B, 4), jnp.float32)  # noqa: F841

    # --- one-time weight prep (hoisted out of the per-call path) -----------
    prepared = jax.block_until_ready(prepare_emoca_params(params))

    # --- run kernel (single-buffered resident weights; silent fallback if
    #     this jax build rejects pl.Buffered(1)) and check vs f32 reference --
    try:
        expr = jax.block_until_ready(
            emoca_recognition_forward(emoca_features, prepared,
                                      single_buffer=True))
    except Exception:
        expr = jax.block_until_ready(
            emoca_recognition_forward(emoca_features, prepared,
                                      single_buffer=False))

    ref = reference_forward(emoca_features, params)
    assert expr.shape == (B, 7)
    # bf16 weights/activations loosen the tolerance vs the f32 reference.
    assert jnp.allclose(expr, ref, atol=5e-2, rtol=5e-2), "mismatch vs reference"

    print("KERNEL_OK")
</pallas_src>

<mosaic_0001>
module attributes {stable_mosaic.version = 11 : i64} {
  func.func @_emoca_mlp_kernel(%arg0: i32, %arg1: memref<8x128xbf16, #tpu.memory_space<vmem>>, %arg2: memref<128x256xbf16, #tpu.memory_space<vmem>>, %arg3: memref<1x256xf32, #tpu.memory_space<vmem>>, %arg4: memref<256x256xbf16, #tpu.memory_space<vmem>>, %arg5: memref<1x256xf32, #tpu.memory_space<vmem>>, %arg6: memref<256x256xbf16, #tpu.memory_space<vmem>>, %arg7: memref<1x256xf32, #tpu.memory_space<vmem>>, %arg8: memref<256x256xbf16, #tpu.memory_space<vmem>>, %arg9: memref<1x256xf32, #tpu.memory_space<vmem>>, %arg10: memref<256x128xbf16, #tpu.memory_space<vmem>>, %arg11: memref<1x128xf32, #tpu.memory_space<vmem>>, %arg12: memref<8x128xf32, #tpu.memory_space<vmem>>) attributes {dimension_semantics = [#tpu.dimension_semantics<parallel>], iteration_bounds = array<i64: 1>, scalar_prefetch = 0 : i64, scratch_operands = 0 : i64, tpu.core_type = #tpu.core_type<tc>, window_params = [{transform_indices = @transform_0, window_bounds = array<i64: 8, 128>}, {pipeline_mode = #tpu.pipeline_mode<synchronous>, transform_indices = @transform_1, window_bounds = array<i64: 128, 256>}, {pipeline_mode = #tpu.pipeline_mode<synchronous>, transform_indices = @transform_2, window_bounds = array<i64: 1, 256>}, {pipeline_mode = #tpu.pipeline_mode<synchronous>, transform_indices = @transform_3, window_bounds = array<i64: 256, 256>}, {pipeline_mode = #tpu.pipeline_mode<synchronous>, transform_indices = @transform_4, window_bounds = array<i64: 1, 256>}, {pipeline_mode = #tpu.pipeline_mode<synchronous>, transform_indices = @transform_5, window_bounds = array<i64: 256, 256>}, {pipeline_mode = #tpu.pipeline_mode<synchronous>, transform_indices = @transform_6, window_bounds = array<i64: 1, 256>}, {pipeline_mode = #tpu.pipeline_mode<synchronous>, transform_indices = @transform_7, window_bounds = array<i64: 256, 256>}, {pipeline_mode = #tpu.pipeline_mode<synchronous>, transform_indices = @transform_8, window_bounds = array<i64: 1, 256>}, {pipeline_mode = #tpu.pipeline_mode<synchronous>, transform_indices = @transform_9, window_bounds = array<i64: 256, 128>}, {pipeline_mode = #tpu.pipeline_mode<synchronous>, transform_indices = @transform_10, window_bounds = array<i64: 1, 128>}, {transform_indices = @transform_11, window_bounds = array<i64: 8, 128>}]} {
    %c0 = arith.constant 0 : index
    %c0_0 = arith.constant 0 : index
    %0 = vector.load %arg1[%c0, %c0_0] : memref<8x128xbf16, #tpu.memory_space<vmem>>, vector<8x128xbf16>
    %c0_1 = arith.constant 0 : index
    %c0_2 = arith.constant 0 : index
    %1 = vector.load %arg2[%c0_1, %c0_2] : memref<128x256xbf16, #tpu.memory_space<vmem>>, vector<128x256xbf16>
    %cst = arith.constant dense<0.000000e+00> : vector<8x256xf32>
    %2 = tpu.matmul %0, %1, %cst {dimension_numbers = #tpu.dot_dimension_numbers<[1], [0], [0], [1], [0, 0, 1, 1], [], []>} : vector<8x128xbf16>, vector<128x256xbf16>, vector<8x256xf32> -> vector<8x256xf32>
    %c0_3 = arith.constant 0 : index
    %c0_4 = arith.constant 0 : index
    %3 = vector.load %arg3[%c0_3, %c0_4] : memref<1x256xf32, #tpu.memory_space<vmem>>, vector<1x256xf32>
    %4 = vector.broadcast %3 : vector<1x256xf32> to vector<8x256xf32>
    %5 = arith.addf %2, %4 : vector<8x256xf32>
    %cst_5 = arith.constant 2.000000e-01 : f32
    %6 = vector.broadcast %cst_5 : f32 to vector<8x256xf32>
    %7 = arith.mulf %6, %5 : vector<8x256xf32>
    %8 = arith.maximumf %5, %7 : vector<8x256xf32>
    %9 = arith.truncf %8 : vector<8x256xf32> to vector<8x256xbf16>
    %c0_6 = arith.constant 0 : index
    %c0_7 = arith.constant 0 : index
    %10 = vector.load %arg4[%c0_6, %c0_7] : memref<256x256xbf16, #tpu.memory_space<vmem>>, vector<256x256xbf16>
    %cst_8 = arith.constant dense<0.000000e+00> : vector<8x256xf32>
    %11 = tpu.matmul %9, %10, %cst_8 {dimension_numbers = #tpu.dot_dimension_numbers<[1], [0], [0], [1], [0, 0, 1, 1], [], []>} : vector<8x256xbf16>, vector<256x256xbf16>, vector<8x256xf32> -> vector<8x256xf32>
    %c0_9 = arith.constant 0 : index
    %c0_10 = arith.constant 0 : index
    %12 = vector.load %arg5[%c0_9, %c0_10] : memref<1x256xf32, #tpu.memory_space<vmem>>, vector<1x256xf32>
    %13 = vector.broadcast %12 : vector<1x256xf32> to vector<8x256xf32>
    %14 = arith.addf %11, %13 : vector<8x256xf32>
    %cst_11 = arith.constant 2.000000e-01 : f32
    %15 = vector.broadcast %cst_11 : f32 to vector<8x256xf32>
    %16 = arith.mulf %15, %14 : vector<8x256xf32>
    %17 = arith.maximumf %14, %16 : vector<8x256xf32>
    %18 = arith.truncf %17 : vector<8x256xf32> to vector<8x256xbf16>
    %c0_12 = arith.constant 0 : index
    %c0_13 = arith.constant 0 : index
    %19 = vector.load %arg6[%c0_12, %c0_13] : memref<256x256xbf16, #tpu.memory_space<vmem>>, vector<256x256xbf16>
    %cst_14 = arith.constant dense<0.000000e+00> : vector<8x256xf32>
    %20 = tpu.matmul %18, %19, %cst_14 {dimension_numbers = #tpu.dot_dimension_numbers<[1], [0], [0], [1], [0, 0, 1, 1], [], []>} : vector<8x256xbf16>, vector<256x256xbf16>, vector<8x256xf32> -> vector<8x256xf32>
    %c0_15 = arith.constant 0 : index
    %c0_16 = arith.constant 0 : index
    %21 = vector.load %arg7[%c0_15, %c0_16] : memref<1x256xf32, #tpu.memory_space<vmem>>, vector<1x256xf32>
    %22 = vector.broadcast %21 : vector<1x256xf32> to vector<8x256xf32>
    %23 = arith.addf %20, %22 : vector<8x256xf32>
    %cst_17 = arith.constant 2.000000e-01 : f32
    %24 = vector.broadcast %cst_17 : f32 to vector<8x256xf32>
    %25 = arith.mulf %24, %23 : vector<8x256xf32>
    %26 = arith.maximumf %23, %25 : vector<8x256xf32>
    %27 = arith.truncf %26 : vector<8x256xf32> to vector<8x256xbf16>
    %c0_18 = arith.constant 0 : index
    %c0_19 = arith.constant 0 : index
    %28 = vector.load %arg8[%c0_18, %c0_19] : memref<256x256xbf16, #tpu.memory_space<vmem>>, vector<256x256xbf16>
    %cst_20 = arith.constant dense<0.000000e+00> : vector<8x256xf32>
    %29 = tpu.matmul %27, %28, %cst_20 {dimension_numbers = #tpu.dot_dimension_numbers<[1], [0], [0], [1], [0, 0, 1, 1], [], []>} : vector<8x256xbf16>, vector<256x256xbf16>, vector<8x256xf32> -> vector<8x256xf32>
    %c0_21 = arith.constant 0 : index
    %c0_22 = arith.constant 0 : index
    %30 = vector.load %arg9[%c0_21, %c0_22] : memref<1x256xf32, #tpu.memory_space<vmem>>, vector<1x256xf32>
    %31 = vector.broadcast %30 : vector<1x256xf32> to vector<8x256xf32>
    %32 = arith.addf %29, %31 : vector<8x256xf32>
    %cst_23 = arith.constant 2.000000e-01 : f32
    %33 = vector.broadcast %cst_23 : f32 to vector<8x256xf32>
    %34 = arith.mulf %33, %32 : vector<8x256xf32>
    %35 = arith.maximumf %32, %34 : vector<8x256xf32>
    %36 = arith.truncf %35 : vector<8x256xf32> to vector<8x256xbf16>
    %c0_24 = arith.constant 0 : index
    %c0_25 = arith.constant 0 : index
    %37 = vector.load %arg10[%c0_24, %c0_25] : memref<256x128xbf16, #tpu.memory_space<vmem>>, vector<256x128xbf16>
    %cst_26 = arith.constant dense<0.000000e+00> : vector<8x128xf32>
    %38 = tpu.matmul %36, %37, %cst_26 {dimension_numbers = #tpu.dot_dimension_numbers<[1], [0], [0], [1], [0, 0, 1, 1], [], []>} : vector<8x256xbf16>, vector<256x128xbf16>, vector<8x128xf32> -> vector<8x128xf32>
    %c0_27 = arith.constant 0 : index
    %c0_28 = arith.constant 0 : index
    %39 = vector.load %arg11[%c0_27, %c0_28] : memref<1x128xf32, #tpu.memory_space<vmem>>, vector<1x128xf32>
    %40 = vector.broadcast %39 : vector<1x128xf32> to vector<8x128xf32>
    %41 = arith.addf %38, %40 : vector<8x128xf32>
    %c0_29 = arith.constant 0 : index
    %c0_30 = arith.constant 0 : index
    %42 = vector.load %arg12[%c0_29, %c0_30] : memref<8x128xf32, #tpu.memory_space<vmem>>, vector<8x128xf32>
    tpu.vector_store %arg12[%c0_29, %c0_30], %41 {strides = array<i32>} : memref<8x128xf32, #tpu.memory_space<vmem>>, vector<8x128xf32>,
    return
  }
  func.func @transform_0(%arg0: i32) -> (i32, i32) {
    %c0_i32 = arith.constant 0 : i32
    %c0_i32_0 = arith.constant 0 : i32
    return %arg0, %c0_i32 : i32, i32
  }
  func.func @transform_1(%arg0: i32) -> (i32, i32) {
    %c0_i32 = arith.constant 0 : i32
    %c0_i32_0 = arith.constant 0 : i32
    %c0_i32_1 = arith.constant 0 : i32
    return %c0_i32, %c0_i32_0 : i32, i32
  }
  func.func @transform_2(%arg0: i32) -> (i32, i32) {
    %c0_i32 = arith.constant 0 : i32
    %c0_i32_0 = arith.constant 0 : i32
    %c0_i32_1 = arith.constant 0 : i32
    return %c0_i32, %c0_i32_0 : i32, i32
  }
  func.func @transform_3(%arg0: i32) -> (i32, i32) {
    %c0_i32 = arith.constant 0 : i32
    %c0_i32_0 = arith.constant 0 : i32
    %c0_i32_1 = arith.constant 0 : i32
    return %c0_i32, %c0_i32_0 : i32, i32
  }
  func.func @transform_4(%arg0: i32) -> (i32, i32) {
    %c0_i32 = arith.constant 0 : i32
    %c0_i32_0 = arith.constant 0 : i32
    %c0_i32_1 = arith.constant 0 : i32
    return %c0_i32, %c0_i32_0 : i32, i32
  }
  func.func @transform_5(%arg0: i32) -> (i32, i32) {
    %c0_i32 = arith.constant 0 : i32
    %c0_i32_0 = arith.constant 0 : i32
    %c0_i32_1 = arith.constant 0 : i32
    return %c0_i32, %c0_i32_0 : i32, i32
  }
  func.func @transform_6(%arg0: i32) -> (i32, i32) {
    %c0_i32 = arith.constant 0 : i32
    %c0_i32_0 = arith.constant 0 : i32
    %c0_i32_1 = arith.constant 0 : i32
    return %c0_i32, %c0_i32_0 : i32, i32
  }
  func.func @transform_7(%arg0: i32) -> (i32, i32) {
    %c0_i32 = arith.constant 0 : i32
    %c0_i32_0 = arith.constant 0 : i32
    %c0_i32_1 = arith.constant 0 : i32
    return %c0_i32, %c0_i32_0 : i32, i32
  }
  func.func @transform_8(%arg0: i32) -> (i32, i32) {
    %c0_i32 = arith.constant 0 : i32
    %c0_i32_0 = arith.constant 0 : i32
    %c0_i32_1 = arith.constant 0 : i32
    return %c0_i32, %c0_i32_0 : i32, i32
  }
  func.func @transform_9(%arg0: i32) -> (i32, i32) {
    %c0_i32 = arith.constant 0 : i32
    %c0_i32_0 = arith.constant 0 : i32
    %c0_i32_1 = arith.constant 0 : i32
    return %c0_i32, %c0_i32_0 : i32, i32
  }
  func.func @transform_10(%arg0: i32) -> (i32, i32) {
    %c0_i32 = arith.constant 0 : i32
    %c0_i32_0 = arith.constant 0 : i32
    %c0_i32_1 = arith.constant 0 : i32
    return %c0_i32, %c0_i32_0 : i32, i32
  }
  func.func @transform_11(%arg0: i32) -> (i32, i32) {
    %c0_i32 = arith.constant 0 : i32
    %c0_i32_0 = arith.constant 0 : i32
    return %arg0, %c0_i32 : i32, i32
  }
}

module attributes {stable_mosaic.version = 11 : i64} {
  func.func @_emoca_mlp_kernel(%arg0: i32, %arg1: memref<8x128xbf16, #tpu.memory_space<vmem>>, %arg2: memref<128x256xbf16, #tpu.memory_space<vmem>>, %arg3: memref<1x256xf32, #tpu.memory_space<vmem>>, %arg4: memref<256x256xbf16, #tpu.memory_space<vmem>>, %arg5: memref<1x256xf32, #tpu.memory_space<vmem>>, %arg6: memref<256x256xbf16, #tpu.memory_space<vmem>>, %arg7: memref<1x256xf32, #tpu.memory_space<vmem>>, %arg8: memref<256x256xbf16, #tpu.memory_space<vmem>>, %arg9: memref<1x256xf32, #tpu.memory_space<vmem>>, %arg10: memref<256x128xbf16, #tpu.memory_space<vmem>>, %arg11: memref<1x128xf32, #tpu.memory_space<vmem>>, %arg12: memref<8x128xf32, #tpu.memory_space<vmem>>) attributes {dimension_semantics = [#tpu.dimension_semantics<parallel>], iteration_bounds = array<i64: 1>, scalar_prefetch = 0 : i64, scratch_operands = 0 : i64, tpu.core_type = #tpu.core_type<tc>, window_params = [{transform_indices = @transform_0, window_bounds = array<i64: 8, 128>}, {pipeline_mode = #tpu.pipeline_mode<synchronous>, transform_indices = @transform_1, window_bounds = array<i64: 128, 256>}, {pipeline_mode = #tpu.pipeline_mode<synchronous>, transform_indices = @transform_2, window_bounds = array<i64: 1, 256>}, {pipeline_mode = #tpu.pipeline_mode<synchronous>, transform_indices = @transform_3, window_bounds = array<i64: 256, 256>}, {pipeline_mode = #tpu.pipeline_mode<synchronous>, transform_indices = @transform_4, window_bounds = array<i64: 1, 256>}, {pipeline_mode = #tpu.pipeline_mode<synchronous>, transform_indices = @transform_5, window_bounds = array<i64: 256, 256>}, {pipeline_mode = #tpu.pipeline_mode<synchronous>, transform_indices = @transform_6, window_bounds = array<i64: 1, 256>}, {pipeline_mode = #tpu.pipeline_mode<synchronous>, transform_indices = @transform_7, window_bounds = array<i64: 256, 256>}, {pipeline_mode = #tpu.pipeline_mode<synchronous>, transform_indices = @transform_8, window_bounds = array<i64: 1, 256>}, {pipeline_mode = #tpu.pipeline_mode<synchronous>, transform_indices = @transform_9, window_bounds = array<i64: 256, 128>}, {pipeline_mode = #tpu.pipeline_mode<synchronous>, transform_indices = @transform_10, window_bounds = array<i64: 1, 128>}, {transform_indices = @transform_11, window_bounds = array<i64: 8, 128>}]} {
    %c0 = arith.constant 0 : index
    %c0_0 = arith.constant 0 : index
    %0 = vector.load %arg1[%c0, %c0_0] : memref<8x128xbf16, #tpu.memory_space<vmem>>, vector<8x128xbf16>
    %c0_1 = arith.constant 0 : index
    %c0_2 = arith.constant 0 : index
    %1 = vector.load %arg2[%c0_1, %c0_2] : memref<128x256xbf16, #tpu.memory_space<vmem>>, vector<128x256xbf16>
    %cst = arith.constant dense<0.000000e+00> : vector<8x256xf32>
    %2 = tpu.matmul %0, %1, %cst {dimension_numbers = #tpu.dot_dimension_numbers<[1], [0], [0], [1], [0, 0, 1, 1], [], []>} : vector<8x128xbf16>, vector<128x256xbf16>, vector<8x256xf32> -> vector<8x256xf32>
    %c0_3 = arith.constant 0 : index
    %c0_4 = arith.constant 0 : index
    %3 = vector.load %arg3[%c0_3, %c0_4] : memref<1x256xf32, #tpu.memory_space<vmem>>, vector<1x256xf32>
    %4 = vector.broadcast %3 : vector<1x256xf32> to vector<8x256xf32>
    %5 = arith.addf %2, %4 : vector<8x256xf32>
    %cst_5 = arith.constant 2.000000e-01 : f32
    %6 = vector.broadcast %cst_5 : f32 to vector<8x256xf32>
    %7 = arith.mulf %6, %5 : vector<8x256xf32>
    %8 = arith.maximumf %5, %7 : vector<8x256xf32>
    %9 = arith.truncf %8 : vector<8x256xf32> to vector<8x256xbf16>
    %c0_6 = arith.constant 0 : index
    %c0_7 = arith.constant 0 : index
    %10 = vector.load %arg4[%c0_6, %c0_7] : memref<256x256xbf16, #tpu.memory_space<vmem>>, vector<256x256xbf16>
    %cst_8 = arith.constant dense<0.000000e+00> : vector<8x256xf32>
    %11 = tpu.matmul %9, %10, %cst_8 {dimension_numbers = #tpu.dot_dimension_numbers<[1], [0], [0], [1], [0, 0, 1, 1], [], []>} : vector<8x256xbf16>, vector<256x256xbf16>, vector<8x256xf32> -> vector<8x256xf32>
    %c0_9 = arith.constant 0 : index
    %c0_10 = arith.constant 0 : index
    %12 = vector.load %arg5[%c0_9, %c0_10] : memref<1x256xf32, #tpu.memory_space<vmem>>, vector<1x256xf32>
    %13 = vector.broadcast %12 : vector<1x256xf32> to vector<8x256xf32>
    %14 = arith.addf %11, %13 : vector<8x256xf32>
    %cst_11 = arith.constant 2.000000e-01 : f32
    %15 = vector.broadcast %cst_11 : f32 to vector<8x256xf32>
    %16 = arith.mulf %15, %14 : vector<8x256xf32>
    %17 = arith.maximumf %14, %16 : vector<8x256xf32>
    %18 = arith.truncf %17 : vector<8x256xf32> to vector<8x256xbf16>
    %c0_12 = arith.constant 0 : index
    %c0_13 = arith.constant 0 : index
    %19 = vector.load %arg6[%c0_12, %c0_13] : memref<256x256xbf16, #tpu.memory_space<vmem>>, vector<256x256xbf16>
    %cst_14 = arith.constant dense<0.000000e+00> : vector<8x256xf32>
    %20 = tpu.matmul %18, %19, %cst_14 {dimension_numbers = #tpu.dot_dimension_numbers<[1], [0], [0], [1], [0, 0, 1, 1], [], []>} : vector<8x256xbf16>, vector<256x256xbf16>, vector<8x256xf32> -> vector<8x256xf32>
    %c0_15 = arith.constant 0 : index
    %c0_16 = arith.constant 0 : index
    %21 = vector.load %arg7[%c0_15, %c0_16] : memref<1x256xf32, #tpu.memory_space<vmem>>, vector<1x256xf32>
    %22 = vector.broadcast %21 : vector<1x256xf32> to vector<8x256xf32>
    %23 = arith.addf %20, %22 : vector<8x256xf32>
    %cst_17 = arith.constant 2.000000e-01 : f32
    %24 = vector.broadcast %cst_17 : f32 to vector<8x256xf32>
    %25 = arith.mulf %24, %23 : vector<8x256xf32>
    %26 = arith.maximumf %23, %25 : vector<8x256xf32>
    %27 = arith.truncf %26 : vector<8x256xf32> to vector<8x256xbf16>
    %c0_18 = arith.constant 0 : index
    %c0_19 = arith.constant 0 : index
    %28 = vector.load %arg8[%c0_18, %c0_19] : memref<256x256xbf16, #tpu.memory_space<vmem>>, vector<256x256xbf16>
    %cst_20 = arith.constant dense<0.000000e+00> : vector<8x256xf32>
    %29 = tpu.matmul %27, %28, %cst_20 {dimension_numbers = #tpu.dot_dimension_numbers<[1], [0], [0], [1], [0, 0, 1, 1], [], []>} : vector<8x256xbf16>, vector<256x256xbf16>, vector<8x256xf32> -> vector<8x256xf32>
    %c0_21 = arith.constant 0 : index
    %c0_22 = arith.constant 0 : index
    %30 = vector.load %arg9[%c0_21, %c0_22] : memref<1x256xf32, #tpu.memory_space<vmem>>, vector<1x256xf32>
    %31 = vector.broadcast %30 : vector<1x256xf32> to vector<8x256xf32>
    %32 = arith.addf %29, %31 : vector<8x256xf32>
    %cst_23 = arith.constant 2.000000e-01 : f32
    %33 = vector.broadcast %cst_23 : f32 to vector<8x256xf32>
    %34 = arith.mulf %33, %32 : vector<8x256xf32>
    %35 = arith.maximumf %32, %34 : vector<8x256xf32>
    %36 = arith.truncf %35 : vector<8x256xf32> to vector<8x256xbf16>
    %c0_24 = arith.constant 0 : index
    %c0_25 = arith.constant 0 : index
    %37 = vector.load %arg10[%c0_24, %c0_25] : memref<256x128xbf16, #tpu.memory_space<vmem>>, vector<256x128xbf16>
    %cst_26 = arith.constant dense<0.000000e+00> : vector<8x128xf32>
    %38 = tpu.matmul %36, %37, %cst_26 {dimension_numbers = #tpu.dot_dimension_numbers<[1], [0], [0], [1], [0, 0, 1, 1], [], []>} : vector<8x256xbf16>, vector<256x128xbf16>, vector<8x128xf32> -> vector<8x128xf32>
    %c0_27 = arith.constant 0 : index
    %c0_28 = arith.constant 0 : index
    %39 = vector.load %arg11[%c0_27, %c0_28] : memref<1x128xf32, #tpu.memory_space<vmem>>, vector<1x128xf32>
    %40 = vector.broadcast %39 : vector<1x128xf32> to vector<8x128xf32>
    %41 = arith.addf %38, %40 : vector<8x128xf32>
    %c0_29 = arith.constant 0 : index
    %c0_30 = arith.constant 0 : index
    %42 = vector.load %arg12[%c0_29, %c0_30] : memref<8x128xf32, #tpu.memory_space<vmem>>, vector<8x128xf32>
    tpu.vector_store %arg12[%c0_29, %c0_30], %41 {strides = array<i32>} : memref<8x128xf32, #tpu.memory_space<vmem>>, vector<8x128xf32>,
    return
  }
  func.func @transform_0(%arg0: i32) -> (i32, i32) {
    %c0_i32 = arith.constant 0 : i32
    %c0_i32_0 = arith.constant 0 : i32
    return %arg0, %c0_i32 : i32, i32
  }
  func.func @transform_1(%arg0: i32) -> (i32, i32) {
    %c0_i32 = arith.constant 0 : i32
    %c0_i32_0 = arith.constant 0 : i32
    %c0_i32_1 = arith.constant 0 : i32
    return %c0_i32, %c0_i32_0 : i32, i32
  }
  func.func @transform_2(%arg0: i32) -> (i32, i32) {
    %c0_i32 = arith.constant 0 : i32
    %c0_i32_0 = arith.constant 0 : i32
    %c0_i32_1 = arith.constant 0 : i32
    return %c0_i32, %c0_i32_0 : i32, i32
  }
  func.func @transform_3(%arg0: i32) -> (i32, i32) {
    %c0_i32 = arith.constant 0 : i32
    %c0_i32_0 = arith.constant 0 : i32
    %c0_i32_1 = arith.constant 0 : i32
    return %c0_i32, %c0_i32_0 : i32, i32
  }
  func.func @transform_4(%arg0: i32) -> (i32, i32) {
    %c0_i32 = arith.constant 0 : i32
    %c0_i32_0 = arith.constant 0 : i32
    %c0_i32_1 = arith.constant 0 : i32
    return %c0_i32, %c0_i32_0 : i32, i32
  }
  func.func @transform_5(%arg0: i32) -> (i32, i32) {
    %c0_i32 = arith.constant 0 : i32
    %c0_i32_0 = arith.constant 0 : i32
    %c0_i32_1 = arith.constant 0 : i32
    return %c0_i32, %c0_i32_0 : i32, i32
  }
  func.func @transform_6(%arg0: i32) -> (i32, i32) {
    %c0_i32 = arith.constant 0 : i32
    %c0_i32_0 = arith.constant 0 : i32
    %c0_i32_1 = arith.constant 0 : i32
    return %c0_i32, %c0_i32_0 : i32, i32
  }
  func.func @transform_7(%arg0: i32) -> (i32, i32) {
    %c0_i32 = arith.constant 0 : i32
    %c0_i32_0 = arith.constant 0 : i32
    %c0_i32_1 = arith.constant 0 : i32
    return %c0_i32, %c0_i32_0 : i32, i32
  }
  func.func @transform_8(%arg0: i32) -> (i32, i32) {
    %c0_i32 = arith.constant 0 : i32
    %c0_i32_0 = arith.constant 0 : i32
    %c0_i32_1 = arith.constant 0 : i32
    return %c0_i32, %c0_i32_0 : i32, i32
  }
  func.func @transform_9(%arg0: i32) -> (i32, i32) {
    %c0_i32 = arith.constant 0 : i32
    %c0_i32_0 = arith.constant 0 : i32
    %c0_i32_1 = arith.constant 0 : i32
    return %c0_i32, %c0_i32_0 : i32, i32
  }
  func.func @transform_10(%arg0: i32) -> (i32, i32) {
    %c0_i32 = arith.constant 0 : i32
    %c0_i32_0 = arith.constant 0 : i32
    %c0_i32_1 = arith.constant 0 : i32
    return %c0_i32, %c0_i32_0 : i32, i32
  }
  func.func @transform_11(%arg0: i32) -> (i32, i32) {
    %c0_i32 = arith.constant 0 : i32
    %c0_i32_0 = arith.constant 0 : i32
    return %arg0, %c0_i32 : i32, i32
  }
}

</mosaic_0001>

<llo_original>
// kernel: emoca_recognition_forward.1
$region0: #{emoca_recognition_forward.1}
  #allocation0 [shape = 'u32[]', space=smem, size = 0x4, offset = 0x4, fixed_abs, tag = 'smem constant byte address 0x4 - core index']
  #allocation1 [shape = 'u32[144,128]{1,0:T(1,128)}', space=vmem, size = 0x12000, scoped, tag = 'internal scratch']
  %s0 = inlined_call_operand.vmem [shape: bf16[8,128], index: 0, kind: input, shape index: {}]
  %s1 = inlined_call_operand.hbm [shape: bf16[128,256], index: 1, kind: input, shape index: {}]
  %s2 = inlined_call_operand.vmem [shape: f32[1,256], index: 2, kind: input, shape index: {}]
  %s3 = inlined_call_operand.hbm [shape: bf16[256,256], index: 3, kind: input, shape index: {}]
  %s4 = inlined_call_operand.vmem [shape: f32[1,256], index: 4, kind: input, shape index: {}]
  %s5 = inlined_call_operand.hbm [shape: bf16[256,256], index: 5, kind: input, shape index: {}]
  %s6 = inlined_call_operand.vmem [shape: f32[1,256], index: 6, kind: input, shape index: {}]
  %s7 = inlined_call_operand.hbm [shape: bf16[256,256], index: 7, kind: input, shape index: {}]
  %s8 = inlined_call_operand.vmem [shape: f32[1,256], index: 8, kind: input, shape index: {}]
  %s9 = inlined_call_operand.hbm [shape: bf16[256,128], index: 9, kind: input, shape index: {}]
  %s10 = inlined_call_operand.vmem [shape: f32[1,128], index: 10, kind: input, shape index: {}]
  %s11 = inlined_call_operand.hbm [shape: f32[8,128], index: 11, kind: output, shape index: {}]
  %s12 = sld [smem:[#allocation0]]
  $region74: #{emoca_recognition_forward.1} parent=0
    _
  %s14 = ssub.s32 1, %s12
  %s15 = scalar_select 0, %s14, %s12
  $region1: #{emoca_recognition_forward.1} parent=0
    #allocation2 [shape = 'u8[65536]{0}', space=vmem, size = 0x10000, scoped, tag = 'input window, operand 1, single buffered']
    #allocation3 [shape = 's32[1]{0}', space=sflag, size = 0x4, scoped, tag = 'scoped memory for emoca_recognition_forward.1']
    #allocation4 [shape = 's32[1]{0}', space=sflag, size = 0x4, scoped, tag = 'scoped memory for emoca_recognition_forward.1']
    #allocation5 [shape = 'u8[131072]{0}', space=vmem, size = 0x20000, scoped, tag = 'input window, operand 3, single buffered']
    #allocation6 [shape = 's32[1]{0}', space=sflag, size = 0x4, scoped, tag = 'scoped memory for emoca_recognition_forward.1']
    #allocation7 [shape = 'u8[131072]{0}', space=vmem, size = 0x20000, scoped, tag = 'input window, operand 5, single buffered']
    #allocation8 [shape = 'u8[131072]{0}', space=vmem, size = 0x20000, scoped, tag = 'input window, operand 7, single buffered']
    #allocation9 [shape = 's32[1]{0}', space=sflag, size = 0x4, scoped, tag = 'scoped memory for emoca_recognition_forward.1']
    #allocation10 [shape = 'u8[65536]{0}', space=vmem, size = 0x10000, scoped, tag = 'input window, operand 9, single buffered']
    #allocation11 [shape = 'u8[4096]{0}', space=vmem, size = 0x1000, scoped, tag = 'output window, operand 0, single buffered']
    %16 = vsyncpa [#allocation3], 0
    %17 = vsyncpa [#allocation6], 0
    %18 = vsyncpa [#allocation9], 0
    %19 = vsyncpa [#allocation4], 0
    // Predicated region
    $region2: #{emoca_recognition_forward.1} parent=1 // pred_check
      _
    $region3: #{emoca_recognition_forward.1} parent=1 // pred_check_branch
      %21 = sbr.rel (0) target = $region5
    $region4: #{emoca_recognition_forward.1} parent=1 // pred_region
      _
    $region5: #{emoca_recognition_forward.1} parent=1 // pred_fallthru
      _
    // Predicated region
    $region6: #{emoca_recognition_forward.1} parent=1 // pred_check
      _
    $region7: #{emoca_recognition_forward.1} parent=1 // pred_check_branch
      %23 = sbr.rel (0) target = $region9
    $region8: #{emoca_recognition_forward.1} parent=1 // pred_region
      %s25 = ssub.s32 2048, 2048
      %26 = vsyncadd [#allocation3], %s25
      %s27 = sshll.u32 [#allocation2], 4
      %s28 = int_to_ptr.vmem [resolvable:$true] %s27
      %33 = dma.hbm_to_vmem [thread:$0]  %s1, 2048, %s28, [#allocation3], 128, 128, 8
    $region9: #{emoca_recognition_forward.1} parent=1 // pred_fallthru
      _
    // Predicated region
    $region10: #{emoca_recognition_forward.1} parent=1 // pred_check
      _
    $region11: #{emoca_recognition_forward.1} parent=1 // pred_check_branch
      %35 = sbr.rel (0) target = $region13
    $region12: #{emoca_recognition_forward.1} parent=1 // pred_region
      _
    $region13: #{emoca_recognition_forward.1} parent=1 // pred_fallthru
      _
    // Predicated region
    $region14: #{emoca_recognition_forward.1} parent=1 // pred_check
      _
    $region15: #{emoca_recognition_forward.1} parent=1 // pred_check_branch
      %37 = sbr.rel (0) target = $region17
    $region16: #{emoca_recognition_forward.1} parent=1 // pred_region
      %s39 = ssub.s32 4096, 4096
      %40 = vsyncadd [#allocation6], %s39
      %s41 = sshll.u32 [#allocation5], 4
      %s42 = int_to_ptr.vmem [resolvable:$true] %s41
      %47 = dma.hbm_to_vmem [thread:$0]  %s3, 4096, %s42, [#allocation6], 128, 128, 8
    $region17: #{emoca_recognition_forward.1} parent=1 // pred_fallthru
      _
    // Predicated region
    $region18: #{emoca_recognition_forward.1} parent=1 // pred_check
      _
    $region19: #{emoca_recognition_forward.1} parent=1 // pred_check_branch
      %49 = sbr.rel (0) target = $region21
    $region20: #{emoca_recognition_forward.1} parent=1 // pred_region
      _
    $region21: #{emoca_recognition_forward.1} parent=1 // pred_fallthru
      _
    // Predicated region
    $region22: #{emoca_recognition_forward.1} parent=1 // pred_check
      _
    $region23: #{emoca_recognition_forward.1} parent=1 // pred_check_branch
      %51 = sbr.rel (0) target = $region25
    $region24: #{emoca_recognition_forward.1} parent=1 // pred_region
      %s53 = ssub.s32 4096, 4096
      %54 = vsyncadd [#allocation6], %s53
      %s55 = sshll.u32 [#allocation7], 4
      %s56 = int_to_ptr.vmem [resolvable:$true] %s55
      %61 = dma.hbm_to_vmem [thread:$0]  %s5, 4096, %s56, [#allocation6], 128, 128, 8
    $region25: #{emoca_recognition_forward.1} parent=1 // pred_fallthru
      _
    // Predicated region
    $region26: #{emoca_recognition_forward.1} parent=1 // pred_check
      _
    $region27: #{emoca_recognition_forward.1} parent=1 // pred_check_branch
      %63 = sbr.rel (0) target = $region29
    $region28: #{emoca_recognition_forward.1} parent=1 // pred_region
      _
    $region29: #{emoca_recognition_forward.1} parent=1 // pred_fallthru
      _
    // Predicated region
    $region30: #{emoca_recognition_forward.1} parent=1 // pred_check
      _
    $region31: #{emoca_recognition_forward.1} parent=1 // pred_check_branch
      %65 = sbr.rel (0) target = $region33
    $region32: #{emoca_recognition_forward.1} parent=1 // pred_region
      %s67 = ssub.s32 4096, 4096
      %68 = vsyncadd [#allocation9], %s67
      %s69 = sshll.u32 [#allocation8], 4
      %s70 = int_to_ptr.vmem [resolvable:$true] %s69
      %75 = dma.hbm_to_vmem [thread:$0]  %s7, 4096, %s70, [#allocation9], 128, 128, 8
    $region33: #{emoca_recognition_forward.1} parent=1 // pred_fallthru
      _
    // Predicated region
    $region34: #{emoca_recognition_forward.1} parent=1 // pred_check
      _
    $region35: #{emoca_recognition_forward.1} parent=1 // pred_check_branch
      %77 = sbr.rel (0) target = $region37
    $region36: #{emoca_recognition_forward.1} parent=1 // pred_region
      _
    $region37: #{emoca_recognition_forward.1} parent=1 // pred_fallthru
      _
    // Predicated region
    $region38: #{emoca_recognition_forward.1} parent=1 // pred_check
      _
    $region39: #{emoca_recognition_forward.1} parent=1 // pred_check_branch
      %79 = sbr.rel (0) target = $region41
    $region40: #{emoca_recognition_forward.1} parent=1 // pred_region
      %s81 = ssub.s32 2048, 2048
      %82 = vsyncadd [#allocation9], %s81
      %s83 = sshll.u32 [#allocation10], 4
      %s84 = int_to_ptr.vmem [resolvable:$true] %s83
      %89 = dma.hbm_to_vmem [thread:$0]  %s9, 2048, %s84, [#allocation9], 64, 64, 4
    $region41: #{emoca_recognition_forward.1} parent=1 // pred_fallthru
      _
    // Predicated region
    $region42: #{emoca_recognition_forward.1} parent=1 // pred_check
      _
    $region43: #{emoca_recognition_forward.1} parent=1 // pred_check_branch
      %91 = sbr.rel (0) target = $region45
    $region44: #{emoca_recognition_forward.1} parent=1 // pred_region
      _
    $region45: #{emoca_recognition_forward.1} parent=1 // pred_fallthru
      _
    // Predicated region
    $region46: #{emoca_recognition_forward.1} parent=1 // pred_check
      _
    $region47: #{emoca_recognition_forward.1} parent=1 // pred_check_branch
      %93 = sbr.rel (0) target = $region49
    $region48: #{emoca_recognition_forward.1} parent=1 // pred_region
      %94 = dma.done [#allocation3], 2048
    $region49: #{emoca_recognition_forward.1} parent=1 // pred_fallthru
      _
    // Predicated region
    $region50: #{emoca_recognition_forward.1} parent=1 // pred_check
      _
    $region51: #{emoca_recognition_forward.1} parent=1 // pred_check_branch
      %96 = sbr.rel (0) target = $region53
    $region52: #{emoca_recognition_forward.1} parent=1 // pred_region
      %97 = dma.done [#allocation6], 4096
    $region53: #{emoca_recognition_forward.1} parent=1 // pred_fallthru
      _
    // Predicated region
    $region54: #{emoca_recognition_forward.1} parent=1 // pred_check
      _
    $region55: #{emoca_recognition_forward.1} parent=1 // pred_check_branch
      %99 = sbr.rel (0) target = $region57
    $region56: #{emoca_recognition_forward.1} parent=1 // pred_region
      %100 = dma.done [#allocation6], 4096
    $region57: #{emoca_recognition_forward.1} parent=1 // pred_fallthru
      _
    // Predicated region
    $region58: #{emoca_recognition_forward.1} parent=1 // pred_check
      _
    $region59: #{emoca_recognition_forward.1} parent=1 // pred_check_branch
      %102 = sbr.rel (0) target = $region61
    $region60: #{emoca_recognition_forward.1} parent=1 // pred_region
      %103 = dma.done [#allocation9], 4096
    $region61: #{emoca_recognition_forward.1} parent=1 // pred_fallthru
      _
    // Predicated region
    $region62: #{emoca_recognition_forward.1} parent=1 // pred_check
      _
    $region63: #{emoca_recognition_forward.1} parent=1 // pred_check_branch
      %105 = sbr.rel (0) target = $region65
    $region64: #{emoca_recognition_forward.1} parent=1 // pred_region
      %106 = dma.done [#allocation9], 2048
    $region65: #{emoca_recognition_forward.1} parent=1 // pred_fallthru
      _
    %v108 = vld [vmem:[%s0] sm:$0xf]
    %v109 = vld [vmem:[#allocation2] sm:$0xff]
    %v110 = vld [vmem:[#allocation2 + $0x8] sm:$0xff]
    %v111 = vld [vmem:[#allocation2 + $0x10] sm:$0xff]
    %v112 = vld [vmem:[#allocation2 + $0x18] sm:$0xff]
    %v113 = vld [vmem:[#allocation2 + $0x20] sm:$0xff]
    %v114 = vld [vmem:[#allocation2 + $0x28] sm:$0xff]
    %v115 = vld [vmem:[#allocation2 + $0x30] sm:$0xff]
    %v116 = vld [vmem:[#allocation2 + $0x38] sm:$0xff]
    %v117 = vld [vmem:[#allocation2 + $0x40] sm:$0xff]
    %v118 = vld [vmem:[#allocation2 + $0x48] sm:$0xff]
    %v119 = vld [vmem:[#allocation2 + $0x50] sm:$0xff]
    %v120 = vld [vmem:[#allocation2 + $0x58] sm:$0xff]
    %v121 = vld [vmem:[#allocation2 + $0x60] sm:$0xff]
    %v122 = vld [vmem:[#allocation2 + $0x68] sm:$0xff]
    %v123 = vld [vmem:[#allocation2 + $0x70] sm:$0xff]
    %v124 = vld [vmem:[#allocation2 + $0x78] sm:$0xff]
    %v125 = vld [vmem:[%s2] sm:$0x3]
    %v127 = vlaneseq
    %v128 = vshrl.u32 %v127, 7
    %v129 = vsub.s32 0, %v128
    %v130 = vrot.slane %v125, %v129
    %v131 = vlaneseq
    %v132 = vshrl.u32 %v131, 7
    %v133 = vsub.s32 1, %v132
    %v134 = vrot.slane %v125, %v133
    %v153 = vunpack.c.l.b16 %v109
    %v154 = vunpack.c.h.b16 %v109
    %v155 = vunpack.c.l.b16 %v110
    %v156 = vunpack.c.h.b16 %v110
    %v157 = vunpack.c.l.b16 %v111
    %v158 = vunpack.c.h.b16 %v111
    %v159 = vunpack.c.l.b16 %v112
    %v160 = vunpack.c.h.b16 %v112
    %v161 = vunpack.c.l.b16 %v113
    %v162 = vunpack.c.h.b16 %v113
    %v163 = vunpack.c.l.b16 %v114
    %v164 = vunpack.c.h.b16 %v114
    %v165 = vunpack.c.l.b16 %v115
    %v166 = vunpack.c.h.b16 %v115
    %v167 = vunpack.c.l.b16 %v116
    %v168 = vunpack.c.h.b16 %v116
    %v169 = vunpack.c.l.b16 %v117
    %v170 = vunpack.c.h.b16 %v117
    %v171 = vunpack.c.l.b16 %v118
    %v172 = vunpack.c.h.b16 %v118
    %v173 = vunpack.c.l.b16 %v119
    %v174 = vunpack.c.h.b16 %v119
    %v175 = vunpack.c.l.b16 %v120
    %v176 = vunpack.c.h.b16 %v120
    %v177 = vunpack.c.l.b16 %v121
    %v178 = vunpack.c.h.b16 %v121
    %v179 = vunpack.c.l.b16 %v122
    %v180 = vunpack.c.h.b16 %v122
    %v181 = vunpack.c.l.b16 %v123
    %v182 = vunpack.c.h.b16 %v123
    %v183 = vunpack.c.l.b16 %v124
    %v184 = vunpack.c.h.b16 %v124
    %v185 = vpack.c.b16 %v155, %v153
    %v186 = vpack.c.b16 %v156, %v154
    %v187 = vpack.c.b16 %v159, %v157
    %v188 = vpack.c.b16 %v160, %v158
    %v189 = vpack.c.b16 %v163, %v161
    %v190 = vpack.c.b16 %v164, %v162
    %v191 = vpack.c.b16 %v167, %v165
    %v192 = vpack.c.b16 %v168, %v166
    %v193 = vpack.c.b16 %v171, %v169
    %v194 = vpack.c.b16 %v172, %v170
    %v195 = vpack.c.b16 %v175, %v173
    %v196 = vpack.c.b16 %v176, %v174
    %v197 = vpack.c.b16 %v179, %v177
    %v198 = vpack.c.b16 %v180, %v178
    %v199 = vpack.c.b16 %v183, %v181
    %v200 = vpack.c.b16 %v184, %v182
    %217 = vmatprep.subr.bf16.mxu0 %v200
    %218 = vmatpush1.bf16.msra.mxu0 %v199
    %219 = vmatprep.subr.bf16.mxu0 %v198
    %220 = vmatpush1.bf16.msra.mxu0 %v197
    %221 = vmatprep.subr.bf16.mxu0 %v196
    %222 = vmatpush1.bf16.msra.mxu0 %v195
    %223 = vmatprep.subr.bf16.mxu0 %v194
    %224 = vmatpush1.bf16.msra.mxu0 %v193
    %225 = vmatprep.subr.bf16.mxu0 %v192
    %226 = vmatpush1.bf16.msra.mxu0 %v191
    %227 = vmatprep.subr.bf16.mxu0 %v190
    %228 = vmatpush1.bf16.msra.mxu0 %v189
    %229 = vmatprep.subr.bf16.mxu0 %v188
    %230 = vmatpush1.bf16.msra.mxu0 %v187
    %231 = vmatprep.subr.bf16.mxu0 %v186
    %232 = vmatpush1.bf16.msra.mxu0 %v185
    %233 = vmatprep.subr.bf16.mxu0 0
    %234 = vmatpush2.bf16.msra.mxu0 0
    %235 = vmatprep.subr.bf16.mxu0 0
    %236 = vmatpush2.bf16.msra.mxu0 0
    %237 = vmatprep.subr.bf16.mxu0 0
    %238 = vmatpush2.bf16.msra.mxu0 0
    %239 = vmatprep.subr.bf16.mxu0 0
    %240 = vmatpush2.bf16.msra.mxu0 0
    %241 = vmatprep.subr.bf16.mxu0 0
    %242 = vmatpush2.bf16.msra.mxu0 0
    %243 = vmatprep.subr.bf16.mxu0 0
    %244 = vmatpush2.bf16.msra.mxu0 0
    %245 = vmatprep.subr.bf16.mxu0 0
    %246 = vmatpush2.bf16.msra.mxu0 0
    %247 = vmatprep.subr.bf16.mxu0 0
    %248 = vmatpush2.bf16.msra.mxu0 0
    %249 = vmatprep.mubr.bf16.mxu0 0
    %250 = vmatmul.mubr.bf16.gmra.mxu0 %v108
    %v251 = vpop.f32.mrf.mxu0
    %v252 = vadd.f32 %v130, %v251
    %v253 = vpop.f32.mrf.mxu0
    %v254 = vadd.f32 %v134, %v253
    %v255 = vpop.f32.mrf.mxu0
    %v256 = vpop.f32.mrf.mxu0
    %257 = vdwg.mxu0
    %v258 = vmul.f32 %v252, 0.2
    %v259 = vmul.f32 %v254, 0.2
    %v260 = vmax.f32 %v252, %v258
    %v261 = vmax.f32 %v254, %v259
    %v262 = vpack.c.bf16 %v260, %v260
    %v263 = vpack.c.bf16 %v261, %v261
    %v264 = vld [vmem:[#allocation5] sm:$0xff]
    %v265 = vld [vmem:[#allocation5 + $0x8] sm:$0xff]
    %v266 = vld [vmem:[#allocation5 + $0x10] sm:$0xff]
    %v267 = vld [vmem:[#allocation5 + $0x18] sm:$0xff]
    %v268 = vld [vmem:[#allocation5 + $0x20] sm:$0xff]
    %v269 = vld [vmem:[#allocation5 + $0x28] sm:$0xff]
    %v270 = vld [vmem:[#allocation5 + $0x30] sm:$0xff]
    %v271 = vld [vmem:[#allocation5 + $0x38] sm:$0xff]
    %v272 = vld [vmem:[#allocation5 + $0x40] sm:$0xff]
    %v273 = vld [vmem:[#allocation5 + $0x48] sm:$0xff]
    %v274 = vld [vmem:[#allocation5 + $0x50] sm:$0xff]
    %v275 = vld [vmem:[#allocation5 + $0x58] sm:$0xff]
    %v276 = vld [vmem:[#allocation5 + $0x60] sm:$0xff]
    %v277 = vld [vmem:[#allocation5 + $0x68] sm:$0xff]
    %v278 = vld [vmem:[#allocation5 + $0x70] sm:$0xff]
    %v279 = vld [vmem:[#allocation5 + $0x78] sm:$0xff]
    %v280 = vld [vmem:[#allocation5 + $0x80] sm:$0xff]
    %v281 = vld [vmem:[#allocation5 + $0x88] sm:$0xff]
    %v282 = vld [vmem:[#allocation5 + $0x90] sm:$0xff]
    %v283 = vld [vmem:[#allocation5 + $0x98] sm:$0xff]
    %v284 = vld [vmem:[#allocation5 + $0xa0] sm:$0xff]
    %v285 = vld [vmem:[#allocation5 + $0xa8] sm:$0xff]
    %v286 = vld [vmem:[#allocation5 + $0xb0] sm:$0xff]
    %v287 = vld [vmem:[#allocation5 + $0xb8] sm:$0xff]
    %v288 = vld [vmem:[#allocation5 + $0xc0] sm:$0xff]
    %v289 = vld [vmem:[#allocation5 + $0xc8] sm:$0xff]
    %v290 = vld [vmem:[#allocation5 + $0xd0] sm:$0xff]
    %v291 = vld [vmem:[#allocation5 + $0xd8] sm:$0xff]
    %v292 = vld [vmem:[#allocation5 + $0xe0] sm:$0xff]
    %v293 = vld [vmem:[#allocation5 + $0xe8] sm:$0xff]
    %v294 = vld [vmem:[#allocation5 + $0xf0] sm:$0xff]
    %v295 = vld [vmem:[#allocation5 + $0xf8] sm:$0xff]
    %v296 = vld [vmem:[%s4] sm:$0x3]
    %v298 = vlaneseq
    %v299 = vshrl.u32 %v298, 7
    %v300 = vsub.s32 0, %v299
    %v301 = vrot.slane %v296, %v300
    %v302 = vlaneseq
    %v303 = vshrl.u32 %v302, 7
    %v304 = vsub.s32 1, %v303
    %v305 = vrot.slane %v296, %v304
    %v340 = vunpack.c.l.b16 %v264
    %v341 = vunpack.c.h.b16 %v264
    %v342 = vunpack.c.l.b16 %v265
    %v343 = vunpack.c.h.b16 %v265
    %v344 = vunpack.c.l.b16 %v266
    %v345 = vunpack.c.h.b16 %v266
    %v346 = vunpack.c.l.b16 %v267
    %v347 = vunpack.c.h.b16 %v267
    %v348 = vunpack.c.l.b16 %v268
    %v349 = vunpack.c.h.b16 %v268
    %v350 = vunpack.c.l.b16 %v269
    %v351 = vunpack.c.h.b16 %v269
    %v352 = vunpack.c.l.b16 %v270
    %v353 = vunpack.c.h.b16 %v270
    %v354 = vunpack.c.l.b16 %v271
    %v355 = vunpack.c.h.b16 %v271
    %v356 = vunpack.c.l.b16 %v272
    %v357 = vunpack.c.h.b16 %v272
    %v358 = vunpack.c.l.b16 %v273
    %v359 = vunpack.c.h.b16 %v273
    %v360 = vunpack.c.l.b16 %v274
    %v361 = vunpack.c.h.b16 %v274
    %v362 = vunpack.c.l.b16 %v275
    %v363 = vunpack.c.h.b16 %v275
    %v364 = vunpack.c.l.b16 %v276
    %v365 = vunpack.c.h.b16 %v276
    %v366 = vunpack.c.l.b16 %v277
    %v367 = vunpack.c.h.b16 %v277
    %v368 = vunpack.c.l.b16 %v278
    %v369 = vunpack.c.h.b16 %v278
    %v370 = vunpack.c.l.b16 %v279
    %v371 = vunpack.c.h.b16 %v279
    %v372 = vunpack.c.l.b16 %v280
    %v373 = vunpack.c.h.b16 %v280
    %v374 = vunpack.c.l.b16 %v281
    %v375 = vunpack.c.h.b16 %v281
    %v376 = vunpack.c.l.b16 %v282
    %v377 = vunpack.c.h.b16 %v282
    %v378 = vunpack.c.l.b16 %v283
    %v379 = vunpack.c.h.b16 %v283
    %v380 = vunpack.c.l.b16 %v284
    %v381 = vunpack.c.h.b16 %v284
    %v382 = vunpack.c.l.b16 %v285
    %v383 = vunpack.c.h.b16 %v285
    %v384 = vunpack.c.l.b16 %v286
    %v385 = vunpack.c.h.b16 %v286
    %v386 = vunpack.c.l.b16 %v287
    %v387 = vunpack.c.h.b16 %v287
    %v388 = vunpack.c.l.b16 %v288
    %v389 = vunpack.c.h.b16 %v288
    %v390 = vunpack.c.l.b16 %v289
    %v391 = vunpack.c.h.b16 %v289
    %v392 = vunpack.c.l.b16 %v290
    %v393 = vunpack.c.h.b16 %v290
    %v394 = vunpack.c.l.b16 %v291
    %v395 = vunpack.c.h.b16 %v291
    %v396 = vunpack.c.l.b16 %v292
    %v397 = vunpack.c.h.b16 %v292
    %v398 = vunpack.c.l.b16 %v293
    %v399 = vunpack.c.h.b16 %v293
    %v400 = vunpack.c.l.b16 %v294
    %v401 = vunpack.c.h.b16 %v294
    %v402 = vunpack.c.l.b16 %v295
    %v403 = vunpack.c.h.b16 %v295
    %v404 = vpack.c.b16 %v342, %v340
    %v405 = vpack.c.b16 %v343, %v341
    %v406 = vpack.c.b16 %v346, %v344
    %v407 = vpack.c.b16 %v347, %v345
    %v408 = vpack.c.b16 %v350, %v348
    %v409 = vpack.c.b16 %v351, %v349
    %v410 = vpack.c.b16 %v354, %v352
    %v411 = vpack.c.b16 %v355, %v353
    %v412 = vpack.c.b16 %v358, %v356
    %v413 = vpack.c.b16 %v359, %v357
    %v414 = vpack.c.b16 %v362, %v360
    %v415 = vpack.c.b16 %v363, %v361
    %v416 = vpack.c.b16 %v366, %v364
    %v417 = vpack.c.b16 %v367, %v365
    %v418 = vpack.c.b16 %v370, %v368
    %v419 = vpack.c.b16 %v371, %v369
    %v420 = vpack.c.b16 %v374, %v372
    %v421 = vpack.c.b16 %v375, %v373
    %v422 = vpack.c.b16 %v378, %v376
    %v423 = vpack.c.b16 %v379, %v377
    %v424 = vpack.c.b16 %v382, %v380
    %v425 = vpack.c.b16 %v383, %v381
    %v426 = vpack.c.b16 %v386, %v384
    %v427 = vpack.c.b16 %v387, %v385
    %v428 = vpack.c.b16 %v390, %v388
    %v429 = vpack.c.b16 %v391, %v389
    %v430 = vpack.c.b16 %v394, %v392
    %v431 = vpack.c.b16 %v395, %v393
    %v432 = vpack.c.b16 %v398, %v396
    %v433 = vpack.c.b16 %v399, %v397
    %v434 = vpack.c.b16 %v402, %v400
    %v435 = vpack.c.b16 %v403, %v401
    %468 = vmatprep.subr.bf16.mxu0 %v419
    %469 = vmatpush1.bf16.msra.mxu0 %v418
    %470 = vmatprep.subr.bf16.mxu0 %v417
    %471 = vmatpush1.bf16.msra.mxu0 %v416
    %472 = vmatprep.subr.bf16.mxu0 %v415
    %473 = vmatpush1.bf16.msra.mxu0 %v414
    %474 = vmatprep.subr.bf16.mxu0 %v413
    %475 = vmatpush1.bf16.msra.mxu0 %v412
    %476 = vmatprep.subr.bf16.mxu0 %v411
    %477 = vmatpush1.bf16.msra.mxu0 %v410
    %478 = vmatprep.subr.bf16.mxu0 %v409
    %479 = vmatpush1.bf16.msra.mxu0 %v408
    %480 = vmatprep.subr.bf16.mxu0 %v407
    %481 = vmatpush1.bf16.msra.mxu0 %v406
    %482 = vmatprep.subr.bf16.mxu0 %v405
    %483 = vmatpush1.bf16.msra.mxu0 %v404
    %484 = vmatprep.subr.bf16.mxu0 %v435
    %485 = vmatpush2.bf16.msra.mxu0 %v434
    %486 = vmatprep.subr.bf16.mxu0 %v433
    %487 = vmatpush2.bf16.msra.mxu0 %v432
    %488 = vmatprep.subr.bf16.mxu0 %v431
    %489 = vmatpush2.bf16.msra.mxu0 %v430
    %490 = vmatprep.subr.bf16.mxu0 %v429
    %491 = vmatpush2.bf16.msra.mxu0 %v428
    %492 = vmatprep.subr.bf16.mxu0 %v427
    %493 = vmatpush2.bf16.msra.mxu0 %v426
    %494 = vmatprep.subr.bf16.mxu0 %v425
    %495 = vmatpush2.bf16.msra.mxu0 %v424
    %496 = vmatprep.subr.bf16.mxu0 %v423
    %497 = vmatpush2.bf16.msra.mxu0 %v422
    %498 = vmatprep.subr.bf16.mxu0 %v421
    %499 = vmatpush2.bf16.msra.mxu0 %v420
    %500 = vmatprep.mubr.bf16.mxu0 %v263
    %501 = vmatmul.mubr.bf16.gmra.mxu0 %v262
    %v502 = vpop.f32.mrf.mxu0
    %v503 = vadd.f32 %v301, %v502
    %v504 = vpop.f32.mrf.mxu0
    %v505 = vadd.f32 %v305, %v504
    %v506 = vpop.f32.mrf.mxu0
    %v507 = vpop.f32.mrf.mxu0
    %508 = vdwg.mxu0
    %v509 = vmul.f32 %v503, 0.2
    %v510 = vmul.f32 %v505, 0.2
    %v511 = vmax.f32 %v503, %v509
    %v512 = vmax.f32 %v505, %v510
    %v513 = vpack.c.bf16 %v511, %v511
    %v514 = vpack.c.bf16 %v512, %v512
    %v515 = vld [vmem:[#allocation7] sm:$0xff]
    %v516 = vld [vmem:[#allocation7 + $0x8] sm:$0xff]
    %v517 = vld [vmem:[#allocation7 + $0x10] sm:$0xff]
    %v518 = vld [vmem:[#allocation7 + $0x18] sm:$0xff]
    %v519 = vld [vmem:[#allocation7 + $0x20] sm:$0xff]
    %v520 = vld [vmem:[#allocation7 + $0x28] sm:$0xff]
    %v521 = vld [vmem:[#allocation7 + $0x30] sm:$0xff]
    %v522 = vld [vmem:[#allocation7 + $0x38] sm:$0xff]
    %v523 = vld [vmem:[#allocation7 + $0x40] sm:$0xff]
    %v524 = vld [vmem:[#allocation7 + $0x48] sm:$0xff]
    %v525 = vld [vmem:[#allocation7 + $0x50] sm:$0xff]
    %v526 = vld [vmem:[#allocation7 + $0x58] sm:$0xff]
    %v527 = vld [vmem:[#allocation7 + $0x60] sm:$0xff]
    %v528 = vld [vmem:[#allocation7 + $0x68] sm:$0xff]
    %v529 = vld [vmem:[#allocation7 + $0x70] sm:$0xff]
    %v530 = vld [vmem:[#allocation7 + $0x78] sm:$0xff]
    %v531 = vld [vmem:[#allocation7 + $0x80] sm:$0xff]
    %v532 = vld [vmem:[#allocation7 + $0x88] sm:$0xff]
    %v533 = vld [vmem:[#allocation7 + $0x90] sm:$0xff]
    %v534 = vld [vmem:[#allocation7 + $0x98] sm:$0xff]
    %v535 = vld [vmem:[#allocation7 + $0xa0] sm:$0xff]
    %v536 = vld [vmem:[#allocation7 + $0xa8] sm:$0xff]
    %v537 = vld [vmem:[#allocation7 + $0xb0] sm:$0xff]
    %v538 = vld [vmem:[#allocation7 + $0xb8] sm:$0xff]
    %v539 = vld [vmem:[#allocation7 + $0xc0] sm:$0xff]
    %v540 = vld [vmem:[#allocation7 + $0xc8] sm:$0xff]
    %v541 = vld [vmem:[#allocation7 + $0xd0] sm:$0xff]
    %v542 = vld [vmem:[#allocation7 + $0xd8] sm:$0xff]
    %v543 = vld [vmem:[#allocation7 + $0xe0] sm:$0xff]
    %v544 = vld [vmem:[#allocation7 + $0xe8] sm:$0xff]
    %v545 = vld [vmem:[#allocation7 + $0xf0] sm:$0xff]
    %v546 = vld [vmem:[#allocation7 + $0xf8] sm:$0xff]
    %v547 = vld [vmem:[%s6] sm:$0x3]
    %v549 = vlaneseq
    %v550 = vshrl.u32 %v549, 7
    %v551 = vsub.s32 0, %v550
    %v552 = vrot.slane %v547, %v551
    %v553 = vlaneseq
    %v554 = vshrl.u32 %v553, 7
    %v555 = vsub.s32 1, %v554
    %v556 = vrot.slane %v547, %v555
    %v591 = vunpack.c.l.b16 %v515
    %v592 = vunpack.c.h.b16 %v515
    %v593 = vunpack.c.l.b16 %v516
    %v594 = vunpack.c.h.b16 %v516
    %v595 = vunpack.c.l.b16 %v517
    %v596 = vunpack.c.h.b16 %v517
    %v597 = vunpack.c.l.b16 %v518
    %v598 = vunpack.c.h.b16 %v518
    %v599 = vunpack.c.l.b16 %v519
    %v600 = vunpack.c.h.b16 %v519
    %v601 = vunpack.c.l.b16 %v520
    %v602 = vunpack.c.h.b16 %v520
    %v603 = vunpack.c.l.b16 %v521
    %v604 = vunpack.c.h.b16 %v521
    %v605 = vunpack.c.l.b16 %v522
    %v606 = vunpack.c.h.b16 %v522
    %v607 = vunpack.c.l.b16 %v523
    %v608 = vunpack.c.h.b16 %v523
    %v609 = vunpack.c.l.b16 %v524
    %v610 = vunpack.c.h.b16 %v524
    %v611 = vunpack.c.l.b16 %v525
    %v612 = vunpack.c.h.b16 %v525
    %v613 = vunpack.c.l.b16 %v526
    %v614 = vunpack.c.h.b16 %v526
    %v615 = vunpack.c.l.b16 %v527
    %v616 = vunpack.c.h.b16 %v527
    %v617 = vunpack.c.l.b16 %v528
    %v618 = vunpack.c.h.b16 %v528
    %v619 = vunpack.c.l.b16 %v529
    %v620 = vunpack.c.h.b16 %v529
    %v621 = vunpack.c.l.b16 %v530
    %v622 = vunpack.c.h.b16 %v530
    %v623 = vunpack.c.l.b16 %v531
    %v624 = vunpack.c.h.b16 %v531
    %v625 = vunpack.c.l.b16 %v532
    %v626 = vunpack.c.h.b16 %v532
    %v627 = vunpack.c.l.b16 %v533
    %v628 = vunpack.c.h.b16 %v533
    %v629 = vunpack.c.l.b16 %v534
    %v630 = vunpack.c.h.b16 %v534
    %v631 = vunpack.c.l.b16 %v535
    %v632 = vunpack.c.h.b16 %v535
    %v633 = vunpack.c.l.b16 %v536
    %v634 = vunpack.c.h.b16 %v536
    %v635 = vunpack.c.l.b16 %v537
    %v636 = vunpack.c.h.b16 %v537
    %v637 = vunpack.c.l.b16 %v538
    %v638 = vunpack.c.h.b16 %v538
    %v639 = vunpack.c.l.b16 %v539
    %v640 = vunpack.c.h.b16 %v539
    %v641 = vunpack.c.l.b16 %v540
    %v642 = vunpack.c.h.b16 %v540
    %v643 = vunpack.c.l.b16 %v541
    %v644 = vunpack.c.h.b16 %v541
    %v645 = vunpack.c.l.b16 %v542
    %v646 = vunpack.c.h.b16 %v542
    %v647 = vunpack.c.l.b16 %v543
    %v648 = vunpack.c.h.b16 %v543
    %v649 = vunpack.c.l.b16 %v544
    %v650 = vunpack.c.h.b16 %v544
    %v651 = vunpack.c.l.b16 %v545
    %v652 = vunpack.c.h.b16 %v545
    %v653 = vunpack.c.l.b16 %v546
    %v654 = vunpack.c.h.b16 %v546
    %v655 = vpack.c.b16 %v593, %v591
    %v656 = vpack.c.b16 %v594, %v592
    %v657 = vpack.c.b16 %v597, %v595
    %v658 = vpack.c.b16 %v598, %v596
    %v659 = vpack.c.b16 %v601, %v599
    %v660 = vpack.c.b16 %v602, %v600
    %v661 = vpack.c.b16 %v605, %v603
    %v662 = vpack.c.b16 %v606, %v604
    %v663 = vpack.c.b16 %v609, %v607
    %v664 = vpack.c.b16 %v610, %v608
    %v665 = vpack.c.b16 %v613, %v611
    %v666 = vpack.c.b16 %v614, %v612
    %v667 = vpack.c.b16 %v617, %v615
    %v668 = vpack.c.b16 %v618, %v616
    %v669 = vpack.c.b16 %v621, %v619
    %v670 = vpack.c.b16 %v622, %v620
    %v671 = vpack.c.b16 %v625, %v623
    %v672 = vpack.c.b16 %v626, %v624
    %v673 = vpack.c.b16 %v629, %v627
    %v674 = vpack.c.b16 %v630, %v628
    %v675 = vpack.c.b16 %v633, %v631
    %v676 = vpack.c.b16 %v634, %v632
    %v677 = vpack.c.b16 %v637, %v635
    %v678 = vpack.c.b16 %v638, %v636
    %v679 = vpack.c.b16 %v641, %v639
    %v680 = vpack.c.b16 %v642, %v640
    %v681 = vpack.c.b16 %v645, %v643
    %v682 = vpack.c.b16 %v646, %v644
    %v683 = vpack.c.b16 %v649, %v647
    %v684 = vpack.c.b16 %v650, %v648
    %v685 = vpack.c.b16 %v653, %v651
    %v686 = vpack.c.b16 %v654, %v652
    %719 = vmatprep.subr.bf16.mxu0 %v670
    %720 = vmatpush1.bf16.msra.mxu0 %v669
    %721 = vmatprep.subr.bf16.mxu0 %v668
    %722 = vmatpush1.bf16.msra.mxu0 %v667
    %723 = vmatprep.subr.bf16.mxu0 %v666
    %724 = vmatpush1.bf16.msra.mxu0 %v665
    %725 = vmatprep.subr.bf16.mxu0 %v664
    %726 = vmatpush1.bf16.msra.mxu0 %v663
    %727 = vmatprep.subr.bf16.mxu0 %v662
    %728 = vmatpush1.bf16.msra.mxu0 %v661
    %729 = vmatprep.subr.bf16.mxu0 %v660
    %730 = vmatpush1.bf16.msra.mxu0 %v659
    %731 = vmatprep.subr.bf16.mxu0 %v658
    %732 = vmatpush1.bf16.msra.mxu0 %v657
    %733 = vmatprep.subr.bf16.mxu0 %v656
    %734 = vmatpush1.bf16.msra.mxu0 %v655
    %735 = vmatprep.subr.bf16.mxu0 %v686
    %736 = vmatpush2.bf16.msra.mxu0 %v685
    %737 = vmatprep.subr.bf16.mxu0 %v684
    %738 = vmatpush2.bf16.msra.mxu0 %v683
    %739 = vmatprep.subr.bf16.mxu0 %v682
    %740 = vmatpush2.bf16.msra.mxu0 %v681
    %741 = vmatprep.subr.bf16.mxu0 %v680
    %742 = vmatpush2.bf16.msra.mxu0 %v679
    %743 = vmatprep.subr.bf16.mxu0 %v678
    %744 = vmatpush2.bf16.msra.mxu0 %v677
    %745 = vmatprep.subr.bf16.mxu0 %v676
    %746 = vmatpush2.bf16.msra.mxu0 %v675
    %747 = vmatprep.subr.bf16.mxu0 %v674
    %748 = vmatpush2.bf16.msra.mxu0 %v673
    %749 = vmatprep.subr.bf16.mxu0 %v672
    %750 = vmatpush2.bf16.msra.mxu0 %v671
    %751 = vmatprep.mubr.bf16.mxu0 %v514
    %752 = vmatmul.mubr.bf16.gmra.mxu0 %v513
    %v753 = vpop.f32.mrf.mxu0
    %v754 = vadd.f32 %v552, %v753
    %v755 = vpop.f32.mrf.mxu0
    %v756 = vadd.f32 %v556, %v755
    %v757 = vpop.f32.mrf.mxu0
    %v758 = vpop.f32.mrf.mxu0
    %759 = vdwg.mxu0
    %v760 = vmul.f32 %v754, 0.2
    %v761 = vmul.f32 %v756, 0.2
    %v762 = vmax.f32 %v754, %v760
    %v763 = vmax.f32 %v756, %v761
    %v764 = vpack.c.bf16 %v762, %v762
    %v765 = vpack.c.bf16 %v763, %v763
    %v766 = vld [vmem:[#allocation8] sm:$0xff]
    %v767 = vld [vmem:[#allocation8 + $0x8] sm:$0xff]
    %v768 = vld [vmem:[#allocation8 + $0x10] sm:$0xff]
    %v769 = vld [vmem:[#allocation8 + $0x18] sm:$0xff]
    %v770 = vld [vmem:[#allocation8 + $0x20] sm:$0xff]
    %v771 = vld [vmem:[#allocation8 + $0x28] sm:$0xff]
    %v772 = vld [vmem:[#allocation8 + $0x30] sm:$0xff]
    %v773 = vld [vmem:[#allocation8 + $0x38] sm:$0xff]
    %v774 = vld [vmem:[#allocation8 + $0x40] sm:$0xff]
    %v775 = vld [vmem:[#allocation8 + $0x48] sm:$0xff]
    %v776 = vld [vmem:[#allocation8 + $0x50] sm:$0xff]
    %v777 = vld [vmem:[#allocation8 + $0x58] sm:$0xff]
    %v778 = vld [vmem:[#allocation8 + $0x60] sm:$0xff]
    %v779 = vld [vmem:[#allocation8 + $0x68] sm:$0xff]
    %v780 = vld [vmem:[#allocation8 + $0x70] sm:$0xff]
    %v781 = vld [vmem:[#allocation8 + $0x78] sm:$0xff]
    %v782 = vld [vmem:[#allocation8 + $0x80] sm:$0xff]
    %v783 = vld [vmem:[#allocation8 + $0x88] sm:$0xff]
    %v784 = vld [vmem:[#allocation8 + $0x90] sm:$0xff]
    %v785 = vld [vmem:[#allocation8 + $0x98] sm:$0xff]
    %v786 = vld [vmem:[#allocation8 + $0xa0] sm:$0xff]
    %v787 = vld [vmem:[#allocation8 + $0xa8] sm:$0xff]
    %v788 = vld [vmem:[#allocation8 + $0xb0] sm:$0xff]
    %v789 = vld [vmem:[#allocation8 + $0xb8] sm:$0xff]
    %v790 = vld [vmem:[#allocation8 + $0xc0] sm:$0xff]
    %v791 = vld [vmem:[#allocation8 + $0xc8] sm:$0xff]
    %v792 = vld [vmem:[#allocation8 + $0xd0] sm:$0xff]
    %v793 = vld [vmem:[#allocation8 + $0xd8] sm:$0xff]
    %v794 = vld [vmem:[#allocation8 + $0xe0] sm:$0xff]
    %v795 = vld [vmem:[#allocation8 + $0xe8] sm:$0xff]
    %v796 = vld [vmem:[#allocation8 + $0xf0] sm:$0xff]
    %v797 = vld [vmem:[#allocation8 + $0xf8] sm:$0xff]
    %v798 = vld [vmem:[%s8] sm:$0x3]
    %v800 = vlaneseq
    %v801 = vshrl.u32 %v800, 7
    %v802 = vsub.s32 0, %v801
    %v803 = vrot.slane %v798, %v802
    %v804 = vlaneseq
    %v805 = vshrl.u32 %v804, 7
    %v806 = vsub.s32 1, %v805
    %v807 = vrot.slane %v798, %v806
    %v842 = vunpack.c.l.b16 %v766
    %v843 = vunpack.c.h.b16 %v766
    %v844 = vunpack.c.l.b16 %v767
    %v845 = vunpack.c.h.b16 %v767
    %v846 = vunpack.c.l.b16 %v768
    %v847 = vunpack.c.h.b16 %v768
    %v848 = vunpack.c.l.b16 %v769
    %v849 = vunpack.c.h.b16 %v769
    %v850 = vunpack.c.l.b16 %v770
    %v851 = vunpack.c.h.b16 %v770
    %v852 = vunpack.c.l.b16 %v771
    %v853 = vunpack.c.h.b16 %v771
    %v854 = vunpack.c.l.b16 %v772
    %v855 = vunpack.c.h.b16 %v772
    %v856 = vunpack.c.l.b16 %v773
    %v857 = vunpack.c.h.b16 %v773
    %v858 = vunpack.c.l.b16 %v774
    %v859 = vunpack.c.h.b16 %v774
    %v860 = vunpack.c.l.b16 %v775
    %v861 = vunpack.c.h.b16 %v775
    %v862 = vunpack.c.l.b16 %v776
    %v863 = vunpack.c.h.b16 %v776
    %v864 = vunpack.c.l.b16 %v777
    %v865 = vunpack.c.h.b16 %v777
    %v866 = vunpack.c.l.b16 %v778
    %v867 = vunpack.c.h.b16 %v778
    %v868 = vunpack.c.l.b16 %v779
    %v869 = vunpack.c.h.b16 %v779
    %v870 = vunpack.c.l.b16 %v780
    %v871 = vunpack.c.h.b16 %v780
    %v872 = vunpack.c.l.b16 %v781
    %v873 = vunpack.c.h.b16 %v781
    %v874 = vunpack.c.l.b16 %v782
    %v875 = vunpack.c.h.b16 %v782
    %v876 = vunpack.c.l.b16 %v783
    %v877 = vunpack.c.h.b16 %v783
    %v878 = vunpack.c.l.b16 %v784
    %v879 = vunpack.c.h.b16 %v784
    %v880 = vunpack.c.l.b16 %v785
    %v881 = vunpack.c.h.b16 %v785
    %v882 = vunpack.c.l.b16 %v786
    %v883 = vunpack.c.h.b16 %v786
    %v884 = vunpack.c.l.b16 %v787
    %v885 = vunpack.c.h.b16 %v787
    %v886 = vunpack.c.l.b16 %v788
    %v887 = vunpack.c.h.b16 %v788
    %v888 = vunpack.c.l.b16 %v789
    %v889 = vunpack.c.h.b16 %v789
    %v890 = vunpack.c.l.b16 %v790
    %v891 = vunpack.c.h.b16 %v790
    %v892 = vunpack.c.l.b16 %v791
    %v893 = vunpack.c.h.b16 %v791
    %v894 = vunpack.c.l.b16 %v792
    %v895 = vunpack.c.h.b16 %v792
    %v896 = vunpack.c.l.b16 %v793
    %v897 = vunpack.c.h.b16 %v793
    %v898 = vunpack.c.l.b16 %v794
    %v899 = vunpack.c.h.b16 %v794
    %v900 = vunpack.c.l.b16 %v795
    %v901 = vunpack.c.h.b16 %v795
    %v902 = vunpack.c.l.b16 %v796
    %v903 = vunpack.c.h.b16 %v796
    %v904 = vunpack.c.l.b16 %v797
    %v905 = vunpack.c.h.b16 %v797
    %v906 = vpack.c.b16 %v844, %v842
    %v907 = vpack.c.b16 %v845, %v843
    %v908 = vpack.c.b16 %v848, %v846
    %v909 = vpack.c.b16 %v849, %v847
    %v910 = vpack.c.b16 %v852, %v850
    %v911 = vpack.c.b16 %v853, %v851
    %v912 = vpack.c.b16 %v856, %v854
    %v913 = vpack.c.b16 %v857, %v855
    %v914 = vpack.c.b16 %v860, %v858
    %v915 = vpack.c.b16 %v861, %v859
    %v916 = vpack.c.b16 %v864, %v862
    %v917 = vpack.c.b16 %v865, %v863
    %v918 = vpack.c.b16 %v868, %v866
    %v919 = vpack.c.b16 %v869, %v867
    %v920 = vpack.c.b16 %v872, %v870
    %v921 = vpack.c.b16 %v873, %v871
    %v922 = vpack.c.b16 %v876, %v874
    %v923 = vpack.c.b16 %v877, %v875
    %v924 = vpack.c.b16 %v880, %v878
    %v925 = vpack.c.b16 %v881, %v879
    %v926 = vpack.c.b16 %v884, %v882
    %v927 = vpack.c.b16 %v885, %v883
    %v928 = vpack.c.b16 %v888, %v886
    %v929 = vpack.c.b16 %v889, %v887
    %v930 = vpack.c.b16 %v892, %v890
    %v931 = vpack.c.b16 %v893, %v891
    %v932 = vpack.c.b16 %v896, %v894
    %v933 = vpack.c.b16 %v897, %v895
    %v934 = vpack.c.b16 %v900, %v898
    %v935 = vpack.c.b16 %v901, %v899
    %v936 = vpack.c.b16 %v904, %v902
    %v937 = vpack.c.b16 %v905, %v903
    %970 = vmatprep.subr.bf16.mxu0 %v921
    %971 = vmatpush1.bf16.msra.mxu0 %v920
    %972 = vmatprep.subr.bf16.mxu0 %v919
    %973 = vmatpush1.bf16.msra.mxu0 %v918
    %974 = vmatprep.subr.bf16.mxu0 %v917
    %975 = vmatpush1.bf16.msra.mxu0 %v916
    %976 = vmatprep.subr.bf16.mxu0 %v915
    %977 = vmatpush1.bf16.msra.mxu0 %v914
    %978 = vmatprep.subr.bf16.mxu0 %v913
    %979 = vmatpush1.bf16.msra.mxu0 %v912
    %980 = vmatprep.subr.bf16.mxu0 %v911
    %981 = vmatpush1.bf16.msra.mxu0 %v910
    %982 = vmatprep.subr.bf16.mxu0 %v909
    %983 = vmatpush1.bf16.msra.mxu0 %v908
    %984 = vmatprep.subr.bf16.mxu0 %v907
    %985 = vmatpush1.bf16.msra.mxu0 %v906
    %986 = vmatprep.subr.bf16.mxu0 %v937
    %987 = vmatpush2.bf16.msra.mxu0 %v936
    %988 = vmatprep.subr.bf16.mxu0 %v935
    %989 = vmatpush2.bf16.msra.mxu0 %v934
    %990 = vmatprep.subr.bf16.mxu0 %v933
    %991 = vmatpush2.bf16.msra.mxu0 %v932
    %992 = vmatprep.subr.bf16.mxu0 %v931
    %993 = vmatpush2.bf16.msra.mxu0 %v930
    %994 = vmatprep.subr.bf16.mxu0 %v929
    %995 = vmatpush2.bf16.msra.mxu0 %v928
    %996 = vmatprep.subr.bf16.mxu0 %v927
    %997 = vmatpush2.bf16.msra.mxu0 %v926
    %998 = vmatprep.subr.bf16.mxu0 %v925
    %999 = vmatpush2.bf16.msra.mxu0 %v924
    %1000 = vmatprep.subr.bf16.mxu0 %v923
    %1001 = vmatpush2.bf16.msra.mxu0 %v922
    %1002 = vmatprep.mubr.bf16.mxu0 %v765
    %1003 = vmatmul.mubr.bf16.gmra.mxu0 %v764
    %v1004 = vpop.f32.mrf.mxu0
    %v1005 = vadd.f32 %v803, %v1004
    %v1006 = vpop.f32.mrf.mxu0
    %v1007 = vadd.f32 %v807, %v1006
    %v1008 = vpop.f32.mrf.mxu0
    %v1009 = vpop.f32.mrf.mxu0
    %1010 = vdwg.mxu0
    %v1011 = vmul.f32 %v1005, 0.2
    %v1012 = vmul.f32 %v1007, 0.2
    %v1013 = vmax.f32 %v1005, %v1011
    %v1014 = vmax.f32 %v1007, %v1012
    %v1015 = vpack.c.bf16 %v1013, %v1013
    %v1016 = vpack.c.bf16 %v1014, %v1014
    %v1017 = vld [vmem:[#allocation10] sm:$0xf]
    %v1018 = vld [vmem:[#allocation10 + $0x4] sm:$0xf]
    %v1019 = vld [vmem:[#allocation10 + $0x8] sm:$0xf]
    %v1020 = vld [vmem:[#allocation10 + $0xc] sm:$0xf]
    %v1021 = vld [vmem:[#allocation10 + $0x10] sm:$0xf]
    %v1022 = vld [vmem:[#allocation10 + $0x14] sm:$0xf]
    %v1023 = vld [vmem:[#allocation10 + $0x18] sm:$0xf]
    %v1024 = vld [vmem:[#allocation10 + $0x1c] sm:$0xf]
    %v1025 = vld [vmem:[#allocation10 + $0x20] sm:$0xf]
    %v1026 = vld [vmem:[#allocation10 + $0x24] sm:$0xf]
    %v1027 = vld [vmem:[#allocation10 + $0x28] sm:$0xf]
    %v1028 = vld [vmem:[#allocation10 + $0x2c] sm:$0xf]
    %v1029 = vld [vmem:[#allocation10 + $0x30] sm:$0xf]
    %v1030 = vld [vmem:[#allocation10 + $0x34] sm:$0xf]
    %v1031 = vld [vmem:[#allocation10 + $0x38] sm:$0xf]
    %v1032 = vld [vmem:[#allocation10 + $0x3c] sm:$0xf]
    %v1033 = vld [vmem:[#allocation10 + $0x40] sm:$0xf]
    %v1034 = vld [vmem:[#allocation10 + $0x44] sm:$0xf]
    %v1035 = vld [vmem:[#allocation10 + $0x48] sm:$0xf]
    %v1036 = vld [vmem:[#allocation10 + $0x4c] sm:$0xf]
    %v1037 = vld [vmem:[#allocation10 + $0x50] sm:$0xf]
    %v1038 = vld [vmem:[#allocation10 + $0x54] sm:$0xf]
    %v1039 = vld [vmem:[#allocation10 + $0x58] sm:$0xf]
    %v1040 = vld [vmem:[#allocation10 + $0x5c] sm:$0xf]
    %v1041 = vld [vmem:[#allocation10 + $0x60] sm:$0xf]
    %v1042 = vld [vmem:[#allocation10 + $0x64] sm:$0xf]
    %v1043 = vld [vmem:[#allocation10 + $0x68] sm:$0xf]
    %v1044 = vld [vmem:[#allocation10 + $0x6c] sm:$0xf]
    %v1045 = vld [vmem:[#allocation10 + $0x70] sm:$0xf]
    %v1046 = vld [vmem:[#allocation10 + $0x74] sm:$0xf]
    %v1047 = vld [vmem:[#allocation10 + $0x78] sm:$0xf]
    %v1048 = vld [vmem:[#allocation10 + $0x7c] sm:$0xf]
    %v1049 = vld [vmem:[%s10] sm:$0x1]
    %v1051 = vlaneseq
    %v1052 = vshrl.u32 %v1051, 7
    %v1053 = vsub.s32 0, %v1052
    %v1054 = vrot.slane %v1049, %v1053
    %v1088 = vunpack.c.l.b16 %v1017
    %v1089 = vunpack.c.l.b16 %v1018
    %v1090 = vunpack.c.l.b16 %v1019
    %v1091 = vunpack.c.l.b16 %v1020
    %v1092 = vunpack.c.l.b16 %v1021
    %v1093 = vunpack.c.l.b16 %v1022
    %v1094 = vunpack.c.l.b16 %v1023
    %v1095 = vunpack.c.l.b16 %v1024
    %v1096 = vunpack.c.l.b16 %v1025
    %v1097 = vunpack.c.l.b16 %v1026
    %v1098 = vunpack.c.l.b16 %v1027
    %v1099 = vunpack.c.l.b16 %v1028
    %v1100 = vunpack.c.l.b16 %v1029
    %v1101 = vunpack.c.l.b16 %v1030
    %v1102 = vunpack.c.l.b16 %v1031
    %v1103 = vunpack.c.l.b16 %v1032
    %v1104 = vunpack.c.l.b16 %v1033
    %v1105 = vunpack.c.l.b16 %v1034
    %v1106 = vunpack.c.l.b16 %v1035
    %v1107 = vunpack.c.l.b16 %v1036
    %v1108 = vunpack.c.l.b16 %v1037
    %v1109 = vunpack.c.l.b16 %v1038
    %v1110 = vunpack.c.l.b16 %v1039
    %v1111 = vunpack.c.l.b16 %v1040
    %v1112 = vunpack.c.l.b16 %v1041
    %v1113 = vunpack.c.l.b16 %v1042
    %v1114 = vunpack.c.l.b16 %v1043
    %v1115 = vunpack.c.l.b16 %v1044
    %v1116 = vunpack.c.l.b16 %v1045
    %v1117 = vunpack.c.l.b16 %v1046
    %v1118 = vunpack.c.l.b16 %v1047
    %v1119 = vunpack.c.l.b16 %v1048
    %v1120 = vpack.c.b16 %v1089, %v1088
    %v1121 = vpack.c.b16 %v1091, %v1090
    %v1122 = vpack.c.b16 %v1093, %v1092
    %v1123 = vpack.c.b16 %v1095, %v1094
    %v1124 = vpack.c.b16 %v1097, %v1096
    %v1125 = vpack.c.b16 %v1099, %v1098
    %v1126 = vpack.c.b16 %v1101, %v1100
    %v1127 = vpack.c.b16 %v1103, %v1102
    %v1128 = vpack.c.b16 %v1105, %v1104
    %v1129 = vpack.c.b16 %v1107, %v1106
    %v1130 = vpack.c.b16 %v1109, %v1108
    %v1131 = vpack.c.b16 %v1111, %v1110
    %v1132 = vpack.c.b16 %v1113, %v1112
    %v1133 = vpack.c.b16 %v1115, %v1114
    %v1134 = vpack.c.b16 %v1117, %v1116
    %v1135 = vpack.c.b16 %v1119, %v1118
    %1152 = vmatprep.subr.bf16.mxu0 0
    %1153 = vmatpush1.bf16.msra.mxu0 %v1127
    %1154 = vmatprep.subr.bf16.mxu0 0
    %1155 = vmatpush1.bf16.msra.mxu0 %v1126
    %1156 = vmatprep.subr.bf16.mxu0 0
    %1157 = vmatpush1.bf16.msra.mxu0 %v1125
    %1158 = vmatprep.subr.bf16.mxu0 0
    %1159 = vmatpush1.bf16.msra.mxu0 %v1124
    %1160 = vmatprep.subr.bf16.mxu0 0
    %1161 = vmatpush1.bf16.msra.mxu0 %v1123
    %1162 = vmatprep.subr.bf16.mxu0 0
    %1163 = vmatpush1.bf16.msra.mxu0 %v1122
    %1164 = vmatprep.subr.bf16.mxu0 0
    %1165 = vmatpush1.bf16.msra.mxu0 %v1121
    %1166 = vmatprep.subr.bf16.mxu0 0
    %1167 = vmatpush1.bf16.msra.mxu0 %v1120
    %1168 = vmatprep.subr.bf16.mxu0 0
    %1169 = vmatpush2.bf16.msra.mxu0 %v1135
    %1170 = vmatprep.subr.bf16.mxu0 0
    %1171 = vmatpush2.bf16.msra.mxu0 %v1134
    %1172 = vmatprep.subr.bf16.mxu0 0
    %1173 = vmatpush2.bf16.msra.mxu0 %v1133
    %1174 = vmatprep.subr.bf16.mxu0 0
    %1175 = vmatpush2.bf16.msra.mxu0 %v1132
    %1176 = vmatprep.subr.bf16.mxu0 0
    %1177 = vmatpush2.bf16.msra.mxu0 %v1131
    %1178 = vmatprep.subr.bf16.mxu0 0
    %1179 = vmatpush2.bf16.msra.mxu0 %v1130
    %1180 = vmatprep.subr.bf16.mxu0 0
    %1181 = vmatpush2.bf16.msra.mxu0 %v1129
    %1182 = vmatprep.subr.bf16.mxu0 0
    %1183 = vmatpush2.bf16.msra.mxu0 %v1128
    %1184 = vmatprep.mubr.bf16.mxu0 %v1016
    %1185 = vmatmul.mubr.bf16.gmra.mxu0 %v1015
    %v1186 = vpop.f32.mrf.mxu0
    %v1187 = vadd.f32 %v1054, %v1186
    %v1188 = vpop.f32.mrf.mxu0
    %v1189 = vpop.f32.mrf.mxu0
    %v1190 = vpop.f32.mrf.mxu0
    %1191 = vdwg.mxu0
    %1192 = vst [vmem:[#allocation11] sm:$0xff] %v1187
    // Predicated region
    $region66: #{emoca_recognition_forward.1} parent=1 // pred_check
      _
    $region67: #{emoca_recognition_forward.1} parent=1 // pred_check_branch
      %1194 = sbr.rel (0) target = $region69
    $region68: #{emoca_recognition_forward.1} parent=1 // pred_region
      %s1196 = ssub.s32 128, 128
      %1197 = vsyncadd [#allocation4], %s1196
      %s1199 = sshll.u32 [#allocation11], 4
      %s1200 = int_to_ptr.vmem [resolvable:$true] %s1199
      %1202 = dma.vmem_to_hbm [thread:$0]  %s1200, 128, %s11, [#allocation4]
    $region69: #{emoca_recognition_forward.1} parent=1 // pred_fallthru
      _
    // Predicated region
    $region70: #{emoca_recognition_forward.1} parent=1 // pred_check
      _
    $region71: #{emoca_recognition_forward.1} parent=1 // pred_check_branch
      %1204 = sbr.rel (0) target = $region73
    $region72: #{emoca_recognition_forward.1} parent=1 // pred_region
      %1205 = dma.done [#allocation4], 128
    $region73: #{emoca_recognition_forward.1} parent=1 // pred_fallthru
      _
    %1206 = vsyncpa [#allocation3], 1
    %1207 = vsyncpa [#allocation6], 1
    %1208 = vsyncpa [#allocation9], 1
    %1209 = vsyncpa [#allocation4], 1

// kernel: emoca_recognition_forward.1
$region0: #{emoca_recognition_forward.1}
  #allocation0 [shape = 'u32[]', space=smem, size = 0x4, offset = 0x4, fixed_abs, tag = 'smem constant byte address 0x4 - core index']
  #allocation1 [shape = 'u32[144,128]{1,0:T(1,128)}', space=vmem, size = 0x12000, scoped, tag = 'internal scratch']
  %s0 = inlined_call_operand.vmem [shape: bf16[8,128], index: 0, kind: input, shape index: {}]
  %s1 = inlined_call_operand.hbm [shape: bf16[128,256], index: 1, kind: input, shape index: {}]
  %s2 = inlined_call_operand.vmem [shape: f32[1,256], index: 2, kind: input, shape index: {}]
  %s3 = inlined_call_operand.hbm [shape: bf16[256,256], index: 3, kind: input, shape index: {}]
  %s4 = inlined_call_operand.vmem [shape: f32[1,256], index: 4, kind: input, shape index: {}]
  %s5 = inlined_call_operand.hbm [shape: bf16[256,256], index: 5, kind: input, shape index: {}]
  %s6 = inlined_call_operand.vmem [shape: f32[1,256], index: 6, kind: input, shape index: {}]
  %s7 = inlined_call_operand.hbm [shape: bf16[256,256], index: 7, kind: input, shape index: {}]
  %s8 = inlined_call_operand.vmem [shape: f32[1,256], index: 8, kind: input, shape index: {}]
  %s9 = inlined_call_operand.hbm [shape: bf16[256,128], index: 9, kind: input, shape index: {}]
  %s10 = inlined_call_operand.vmem [shape: f32[1,128], index: 10, kind: input, shape index: {}]
  %s11 = inlined_call_operand.hbm [shape: f32[8,128], index: 11, kind: output, shape index: {}]
  %s12 = sld [smem:[#allocation0]]
  $region74: #{emoca_recognition_forward.1} parent=0
    _
  %s14 = ssub.s32 1, %s12
  %s15 = scalar_select 0, %s14, %s12
  $region1: #{emoca_recognition_forward.1} parent=0
    #allocation2 [shape = 'u8[65536]{0}', space=vmem, size = 0x10000, scoped, tag = 'input window, operand 1, single buffered']
    #allocation3 [shape = 's32[1]{0}', space=sflag, size = 0x4, scoped, tag = 'scoped memory for emoca_recognition_forward.1']
    #allocation4 [shape = 's32[1]{0}', space=sflag, size = 0x4, scoped, tag = 'scoped memory for emoca_recognition_forward.1']
    #allocation5 [shape = 'u8[131072]{0}', space=vmem, size = 0x20000, scoped, tag = 'input window, operand 3, single buffered']
    #allocation6 [shape = 's32[1]{0}', space=sflag, size = 0x4, scoped, tag = 'scoped memory for emoca_recognition_forward.1']
    #allocation7 [shape = 'u8[131072]{0}', space=vmem, size = 0x20000, scoped, tag = 'input window, operand 5, single buffered']
    #allocation8 [shape = 'u8[131072]{0}', space=vmem, size = 0x20000, scoped, tag = 'input window, operand 7, single buffered']
    #allocation9 [shape = 's32[1]{0}', space=sflag, size = 0x4, scoped, tag = 'scoped memory for emoca_recognition_forward.1']
    #allocation10 [shape = 'u8[65536]{0}', space=vmem, size = 0x10000, scoped, tag = 'input window, operand 9, single buffered']
    #allocation11 [shape = 'u8[4096]{0}', space=vmem, size = 0x1000, scoped, tag = 'output window, operand 0, single buffered']
    %16 = vsyncpa [#allocation3], 0
    %17 = vsyncpa [#allocation6], 0
    %18 = vsyncpa [#allocation9], 0
    %19 = vsyncpa [#allocation4], 0
    // Predicated region
    $region2: #{emoca_recognition_forward.1} parent=1 // pred_check
      _
    $region3: #{emoca_recognition_forward.1} parent=1 // pred_check_branch
      %21 = sbr.rel (0) target = $region5
    $region4: #{emoca_recognition_forward.1} parent=1 // pred_region
      _
    $region5: #{emoca_recognition_forward.1} parent=1 // pred_fallthru
      _
    // Predicated region
    $region6: #{emoca_recognition_forward.1} parent=1 // pred_check
      _
    $region7: #{emoca_recognition_forward.1} parent=1 // pred_check_branch
      %23 = sbr.rel (0) target = $region9
    $region8: #{emoca_recognition_forward.1} parent=1 // pred_region
      %s25 = ssub.s32 2048, 2048
      %26 = vsyncadd [#allocation3], %s25
      %s27 = sshll.u32 [#allocation2], 4
      %s28 = int_to_ptr.vmem [resolvable:$true] %s27
      %33 = dma.hbm_to_vmem [thread:$0]  %s1, 2048, %s28, [#allocation3], 128, 128, 8
    $region9: #{emoca_recognition_forward.1} parent=1 // pred_fallthru
      _
    // Predicated region
    $region10: #{emoca_recognition_forward.1} parent=1 // pred_check
      _
    $region11: #{emoca_recognition_forward.1} parent=1 // pred_check_branch
      %35 = sbr.rel (0) target = $region13
    $region12: #{emoca_recognition_forward.1} parent=1 // pred_region
      _
    $region13: #{emoca_recognition_forward.1} parent=1 // pred_fallthru
      _
    // Predicated region
    $region14: #{emoca_recognition_forward.1} parent=1 // pred_check
      _
    $region15: #{emoca_recognition_forward.1} parent=1 // pred_check_branch
      %37 = sbr.rel (0) target = $region17
    $region16: #{emoca_recognition_forward.1} parent=1 // pred_region
      %s39 = ssub.s32 4096, 4096
      %40 = vsyncadd [#allocation6], %s39
      %s41 = sshll.u32 [#allocation5], 4
      %s42 = int_to_ptr.vmem [resolvable:$true] %s41
      %47 = dma.hbm_to_vmem [thread:$0]  %s3, 4096, %s42, [#allocation6], 128, 128, 8
    $region17: #{emoca_recognition_forward.1} parent=1 // pred_fallthru
      _
    // Predicated region
    $region18: #{emoca_recognition_forward.1} parent=1 // pred_check
      _
    $region19: #{emoca_recognition_forward.1} parent=1 // pred_check_branch
      %49 = sbr.rel (0) target = $region21
    $region20: #{emoca_recognition_forward.1} parent=1 // pred_region
      _
    $region21: #{emoca_recognition_forward.1} parent=1 // pred_fallthru
      _
    // Predicated region
    $region22: #{emoca_recognition_forward.1} parent=1 // pred_check
      _
    $region23: #{emoca_recognition_forward.1} parent=1 // pred_check_branch
      %51 = sbr.rel (0) target = $region25
    $region24: #{emoca_recognition_forward.1} parent=1 // pred_region
      %s53 = ssub.s32 4096, 4096
      %54 = vsyncadd [#allocation6], %s53
      %s55 = sshll.u32 [#allocation7], 4
      %s56 = int_to_ptr.vmem [resolvable:$true] %s55
      %61 = dma.hbm_to_vmem [thread:$0]  %s5, 4096, %s56, [#allocation6], 128, 128, 8
    $region25: #{emoca_recognition_forward.1} parent=1 // pred_fallthru
      _
    // Predicated region
    $region26: #{emoca_recognition_forward.1} parent=1 // pred_check
      _
    $region27: #{emoca_recognition_forward.1} parent=1 // pred_check_branch
      %63 = sbr.rel (0) target = $region29
    $region28: #{emoca_recognition_forward.1} parent=1 // pred_region
      _
    $region29: #{emoca_recognition_forward.1} parent=1 // pred_fallthru
      _
    // Predicated region
    $region30: #{emoca_recognition_forward.1} parent=1 // pred_check
      _
    $region31: #{emoca_recognition_forward.1} parent=1 // pred_check_branch
      %65 = sbr.rel (0) target = $region33
    $region32: #{emoca_recognition_forward.1} parent=1 // pred_region
      %s67 = ssub.s32 4096, 4096
      %68 = vsyncadd [#allocation9], %s67
      %s69 = sshll.u32 [#allocation8], 4
      %s70 = int_to_ptr.vmem [resolvable:$true] %s69
      %75 = dma.hbm_to_vmem [thread:$0]  %s7, 4096, %s70, [#allocation9], 128, 128, 8
    $region33: #{emoca_recognition_forward.1} parent=1 // pred_fallthru
      _
    // Predicated region
    $region34: #{emoca_recognition_forward.1} parent=1 // pred_check
      _
    $region35: #{emoca_recognition_forward.1} parent=1 // pred_check_branch
      %77 = sbr.rel (0) target = $region37
    $region36: #{emoca_recognition_forward.1} parent=1 // pred_region
      _
    $region37: #{emoca_recognition_forward.1} parent=1 // pred_fallthru
      _
    // Predicated region
    $region38: #{emoca_recognition_forward.1} parent=1 // pred_check
      _
    $region39: #{emoca_recognition_forward.1} parent=1 // pred_check_branch
      %79 = sbr.rel (0) target = $region41
    $region40: #{emoca_recognition_forward.1} parent=1 // pred_region
      %s81 = ssub.s32 2048, 2048
      %82 = vsyncadd [#allocation9], %s81
      %s83 = sshll.u32 [#allocation10], 4
      %s84 = int_to_ptr.vmem [resolvable:$true] %s83
      %89 = dma.hbm_to_vmem [thread:$0]  %s9, 2048, %s84, [#allocation9], 64, 64, 4
    $region41: #{emoca_recognition_forward.1} parent=1 // pred_fallthru
      _
    // Predicated region
    $region42: #{emoca_recognition_forward.1} parent=1 // pred_check
      _
    $region43: #{emoca_recognition_forward.1} parent=1 // pred_check_branch
      %91 = sbr.rel (0) target = $region45
    $region44: #{emoca_recognition_forward.1} parent=1 // pred_region
      _
    $region45: #{emoca_recognition_forward.1} parent=1 // pred_fallthru
      _
    // Predicated region
    $region46: #{emoca_recognition_forward.1} parent=1 // pred_check
      _
    $region47: #{emoca_recognition_forward.1} parent=1 // pred_check_branch
      %93 = sbr.rel (0) target = $region49
    $region48: #{emoca_recognition_forward.1} parent=1 // pred_region
      %94 = dma.done [#allocation3], 2048
    $region49: #{emoca_recognition_forward.1} parent=1 // pred_fallthru
      _
    // Predicated region
    $region50: #{emoca_recognition_forward.1} parent=1 // pred_check
      _
    $region51: #{emoca_recognition_forward.1} parent=1 // pred_check_branch
      %96 = sbr.rel (0) target = $region53
    $region52: #{emoca_recognition_forward.1} parent=1 // pred_region
      %97 = dma.done [#allocation6], 4096
    $region53: #{emoca_recognition_forward.1} parent=1 // pred_fallthru
      _
    // Predicated region
    $region54: #{emoca_recognition_forward.1} parent=1 // pred_check
      _
    $region55: #{emoca_recognition_forward.1} parent=1 // pred_check_branch
      %99 = sbr.rel (0) target = $region57
    $region56: #{emoca_recognition_forward.1} parent=1 // pred_region
      %100 = dma.done [#allocation6], 4096
    $region57: #{emoca_recognition_forward.1} parent=1 // pred_fallthru
      _
    // Predicated region
    $region58: #{emoca_recognition_forward.1} parent=1 // pred_check
      _
    $region59: #{emoca_recognition_forward.1} parent=1 // pred_check_branch
      %102 = sbr.rel (0) target = $region61
    $region60: #{emoca_recognition_forward.1} parent=1 // pred_region
      %103 = dma.done [#allocation9], 4096
    $region61: #{emoca_recognition_forward.1} parent=1 // pred_fallthru
      _
    // Predicated region
    $region62: #{emoca_recognition_forward.1} parent=1 // pred_check
      _
    $region63: #{emoca_recognition_forward.1} parent=1 // pred_check_branch
      %105 = sbr.rel (0) target = $region65
    $region64: #{emoca_recognition_forward.1} parent=1 // pred_region
      %106 = dma.done [#allocation9], 2048
    $region65: #{emoca_recognition_forward.1} parent=1 // pred_fallthru
      _
    %v108 = vld [vmem:[%s0] sm:$0xf]
    %v109 = vld [vmem:[#allocation2] sm:$0xff]
    %v110 = vld [vmem:[#allocation2 + $0x8] sm:$0xff]
    %v111 = vld [vmem:[#allocation2 + $0x10] sm:$0xff]
    %v112 = vld [vmem:[#allocation2 + $0x18] sm:$0xff]
    %v113 = vld [vmem:[#allocation2 + $0x20] sm:$0xff]
    %v114 = vld [vmem:[#allocation2 + $0x28] sm:$0xff]
    %v115 = vld [vmem:[#allocation2 + $0x30] sm:$0xff]
    %v116 = vld [vmem:[#allocation2 + $0x38] sm:$0xff]
    %v117 = vld [vmem:[#allocation2 + $0x40] sm:$0xff]
    %v118 = vld [vmem:[#allocation2 + $0x48] sm:$0xff]
    %v119 = vld [vmem:[#allocation2 + $0x50] sm:$0xff]
    %v120 = vld [vmem:[#allocation2 + $0x58] sm:$0xff]
    %v121 = vld [vmem:[#allocation2 + $0x60] sm:$0xff]
    %v122 = vld [vmem:[#allocation2 + $0x68] sm:$0xff]
    %v123 = vld [vmem:[#allocation2 + $0x70] sm:$0xff]
    %v124 = vld [vmem:[#allocation2 + $0x78] sm:$0xff]
    %v125 = vld [vmem:[%s2] sm:$0x3]
    %v127 = vlaneseq
    %v128 = vshrl.u32 %v127, 7
    %v129 = vsub.s32 0, %v128
    %v130 = vrot.slane %v125, %v129
    %v131 = vlaneseq
    %v132 = vshrl.u32 %v131, 7
    %v133 = vsub.s32 1, %v132
    %v134 = vrot.slane %v125, %v133
    %v153 = vunpack.c.l.b16 %v109
    %v154 = vunpack.c.h.b16 %v109
    %v155 = vunpack.c.l.b16 %v110
    %v156 = vunpack.c.h.b16 %v110
    %v157 = vunpack.c.l.b16 %v111
    %v158 = vunpack.c.h.b16 %v111
    %v159 = vunpack.c.l.b16 %v112
    %v160 = vunpack.c.h.b16 %v112
    %v161 = vunpack.c.l.b16 %v113
    %v162 = vunpack.c.h.b16 %v113
    %v163 = vunpack.c.l.b16 %v114
    %v164 = vunpack.c.h.b16 %v114
    %v165 = vunpack.c.l.b16 %v115
    %v166 = vunpack.c.h.b16 %v115
    %v167 = vunpack.c.l.b16 %v116
    %v168 = vunpack.c.h.b16 %v116
    %v169 = vunpack.c.l.b16 %v117
    %v170 = vunpack.c.h.b16 %v117
    %v171 = vunpack.c.l.b16 %v118
    %v172 = vunpack.c.h.b16 %v118
    %v173 = vunpack.c.l.b16 %v119
    %v174 = vunpack.c.h.b16 %v119
    %v175 = vunpack.c.l.b16 %v120
    %v176 = vunpack.c.h.b16 %v120
    %v177 = vunpack.c.l.b16 %v121
    %v178 = vunpack.c.h.b16 %v121
    %v179 = vunpack.c.l.b16 %v122
    %v180 = vunpack.c.h.b16 %v122
    %v181 = vunpack.c.l.b16 %v123
    %v182 = vunpack.c.h.b16 %v123
    %v183 = vunpack.c.l.b16 %v124
    %v184 = vunpack.c.h.b16 %v124
    %v185 = vpack.c.b16 %v155, %v153
    %v186 = vpack.c.b16 %v156, %v154
    %v187 = vpack.c.b16 %v159, %v157
    %v188 = vpack.c.b16 %v160, %v158
    %v189 = vpack.c.b16 %v163, %v161
    %v190 = vpack.c.b16 %v164, %v162
    %v191 = vpack.c.b16 %v167, %v165
    %v192 = vpack.c.b16 %v168, %v166
    %v193 = vpack.c.b16 %v171, %v169
    %v194 = vpack.c.b16 %v172, %v170
    %v195 = vpack.c.b16 %v175, %v173
    %v196 = vpack.c.b16 %v176, %v174
    %v197 = vpack.c.b16 %v179, %v177
    %v198 = vpack.c.b16 %v180, %v178
    %v199 = vpack.c.b16 %v183, %v181
    %v200 = vpack.c.b16 %v184, %v182
    %217 = vmatprep.subr.bf16.mxu0 %v200
    %218 = vmatpush1.bf16.msra.mxu0 %v199
    %219 = vmatprep.subr.bf16.mxu0 %v198
    %220 = vmatpush1.bf16.msra.mxu0 %v197
    %221 = vmatprep.subr.bf16.mxu0 %v196
    %222 = vmatpush1.bf16.msra.mxu0 %v195
    %223 = vmatprep.subr.bf16.mxu0 %v194
    %224 = vmatpush1.bf16.msra.mxu0 %v193
    %225 = vmatprep.subr.bf16.mxu0 %v192
    %226 = vmatpush1.bf16.msra.mxu0 %v191
    %227 = vmatprep.subr.bf16.mxu0 %v190
    %228 = vmatpush1.bf16.msra.mxu0 %v189
    %229 = vmatprep.subr.bf16.mxu0 %v188
    %230 = vmatpush1.bf16.msra.mxu0 %v187
    %231 = vmatprep.subr.bf16.mxu0 %v186
    %232 = vmatpush1.bf16.msra.mxu0 %v185
    %233 = vmatprep.subr.bf16.mxu0 0
    %234 = vmatpush2.bf16.msra.mxu0 0
    %235 = vmatprep.subr.bf16.mxu0 0
    %236 = vmatpush2.bf16.msra.mxu0 0
    %237 = vmatprep.subr.bf16.mxu0 0
    %238 = vmatpush2.bf16.msra.mxu0 0
    %239 = vmatprep.subr.bf16.mxu0 0
    %240 = vmatpush2.bf16.msra.mxu0 0
    %241 = vmatprep.subr.bf16.mxu0 0
    %242 = vmatpush2.bf16.msra.mxu0 0
    %243 = vmatprep.subr.bf16.mxu0 0
    %244 = vmatpush2.bf16.msra.mxu0 0
    %245 = vmatprep.subr.bf16.mxu0 0
    %246 = vmatpush2.bf16.msra.mxu0 0
    %247 = vmatprep.subr.bf16.mxu0 0
    %248 = vmatpush2.bf16.msra.mxu0 0
    %249 = vmatprep.mubr.bf16.mxu0 0
    %250 = vmatmul.mubr.bf16.gmra.mxu0 %v108
    %v251 = vpop.f32.mrf.mxu0
    %v252 = vadd.f32 %v130, %v251
    %v253 = vpop.f32.mrf.mxu0
    %v254 = vadd.f32 %v134, %v253
    %v255 = vpop.f32.mrf.mxu0
    %v256 = vpop.f32.mrf.mxu0
    %257 = vdwg.mxu0
    %v258 = vmul.f32 %v252, 0.2
    %v259 = vmul.f32 %v254, 0.2
    %v260 = vmax.f32 %v252, %v258
    %v261 = vmax.f32 %v254, %v259
    %v262 = vpack.c.bf16 %v260, %v260
    %v263 = vpack.c.bf16 %v261, %v261
    %v264 = vld [vmem:[#allocation5] sm:$0xff]
    %v265 = vld [vmem:[#allocation5 + $0x8] sm:$0xff]
    %v266 = vld [vmem:[#allocation5 + $0x10] sm:$0xff]
    %v267 = vld [vmem:[#allocation5 + $0x18] sm:$0xff]
    %v268 = vld [vmem:[#allocation5 + $0x20] sm:$0xff]
    %v269 = vld [vmem:[#allocation5 + $0x28] sm:$0xff]
    %v270 = vld [vmem:[#allocation5 + $0x30] sm:$0xff]
    %v271 = vld [vmem:[#allocation5 + $0x38] sm:$0xff]
    %v272 = vld [vmem:[#allocation5 + $0x40] sm:$0xff]
    %v273 = vld [vmem:[#allocation5 + $0x48] sm:$0xff]
    %v274 = vld [vmem:[#allocation5 + $0x50] sm:$0xff]
    %v275 = vld [vmem:[#allocation5 + $0x58] sm:$0xff]
    %v276 = vld [vmem:[#allocation5 + $0x60] sm:$0xff]
    %v277 = vld [vmem:[#allocation5 + $0x68] sm:$0xff]
    %v278 = vld [vmem:[#allocation5 + $0x70] sm:$0xff]
    %v279 = vld [vmem:[#allocation5 + $0x78] sm:$0xff]
    %v280 = vld [vmem:[#allocation5 + $0x80] sm:$0xff]
    %v281 = vld [vmem:[#allocation5 + $0x88] sm:$0xff]
    %v282 = vld [vmem:[#allocation5 + $0x90] sm:$0xff]
    %v283 = vld [vmem:[#allocation5 + $0x98] sm:$0xff]
    %v284 = vld [vmem:[#allocation5 + $0xa0] sm:$0xff]
    %v285 = vld [vmem:[#allocation5 + $0xa8] sm:$0xff]
    %v286 = vld [vmem:[#allocation5 + $0xb0] sm:$0xff]
    %v287 = vld [vmem:[#allocation5 + $0xb8] sm:$0xff]
    %v288 = vld [vmem:[#allocation5 + $0xc0] sm:$0xff]
    %v289 = vld [vmem:[#allocation5 + $0xc8] sm:$0xff]
    %v290 = vld [vmem:[#allocation5 + $0xd0] sm:$0xff]
    %v291 = vld [vmem:[#allocation5 + $0xd8] sm:$0xff]
    %v292 = vld [vmem:[#allocation5 + $0xe0] sm:$0xff]
    %v293 = vld [vmem:[#allocation5 + $0xe8] sm:$0xff]
    %v294 = vld [vmem:[#allocation5 + $0xf0] sm:$0xff]
    %v295 = vld [vmem:[#allocation5 + $0xf8] sm:$0xff]
    %v296 = vld [vmem:[%s4] sm:$0x3]
    %v298 = vlaneseq
    %v299 = vshrl.u32 %v298, 7
    %v300 = vsub.s32 0, %v299
    %v301 = vrot.slane %v296, %v300
    %v302 = vlaneseq
    %v303 = vshrl.u32 %v302, 7
    %v304 = vsub.s32 1, %v303
    %v305 = vrot.slane %v296, %v304
    %v340 = vunpack.c.l.b16 %v264
    %v341 = vunpack.c.h.b16 %v264
    %v342 = vunpack.c.l.b16 %v265
    %v343 = vunpack.c.h.b16 %v265
    %v344 = vunpack.c.l.b16 %v266
    %v345 = vunpack.c.h.b16 %v266
    %v346 = vunpack.c.l.b16 %v267
    %v347 = vunpack.c.h.b16 %v267
    %v348 = vunpack.c.l.b16 %v268
    %v349 = vunpack.c.h.b16 %v268
    %v350 = vunpack.c.l.b16 %v269
    %v351 = vunpack.c.h.b16 %v269
    %v352 = vunpack.c.l.b16 %v270
    %v353 = vunpack.c.h.b16 %v270
    %v354 = vunpack.c.l.b16 %v271
    %v355 = vunpack.c.h.b16 %v271
    %v356 = vunpack.c.l.b16 %v272
    %v357 = vunpack.c.h.b16 %v272
    %v358 = vunpack.c.l.b16 %v273
    %v359 = vunpack.c.h.b16 %v273
    %v360 = vunpack.c.l.b16 %v274
    %v361 = vunpack.c.h.b16 %v274
    %v362 = vunpack.c.l.b16 %v275
    %v363 = vunpack.c.h.b16 %v275
    %v364 = vunpack.c.l.b16 %v276
    %v365 = vunpack.c.h.b16 %v276
    %v366 = vunpack.c.l.b16 %v277
    %v367 = vunpack.c.h.b16 %v277
    %v368 = vunpack.c.l.b16 %v278
    %v369 = vunpack.c.h.b16 %v278
    %v370 = vunpack.c.l.b16 %v279
    %v371 = vunpack.c.h.b16 %v279
    %v372 = vunpack.c.l.b16 %v280
    %v373 = vunpack.c.h.b16 %v280
    %v374 = vunpack.c.l.b16 %v281
    %v375 = vunpack.c.h.b16 %v281
    %v376 = vunpack.c.l.b16 %v282
    %v377 = vunpack.c.h.b16 %v282
    %v378 = vunpack.c.l.b16 %v283
    %v379 = vunpack.c.h.b16 %v283
    %v380 = vunpack.c.l.b16 %v284
    %v381 = vunpack.c.h.b16 %v284
    %v382 = vunpack.c.l.b16 %v285
    %v383 = vunpack.c.h.b16 %v285
    %v384 = vunpack.c.l.b16 %v286
    %v385 = vunpack.c.h.b16 %v286
    %v386 = vunpack.c.l.b16 %v287
    %v387 = vunpack.c.h.b16 %v287
    %v388 = vunpack.c.l.b16 %v288
    %v389 = vunpack.c.h.b16 %v288
    %v390 = vunpack.c.l.b16 %v289
    %v391 = vunpack.c.h.b16 %v289
    %v392 = vunpack.c.l.b16 %v290
    %v393 = vunpack.c.h.b16 %v290
    %v394 = vunpack.c.l.b16 %v291
    %v395 = vunpack.c.h.b16 %v291
    %v396 = vunpack.c.l.b16 %v292
    %v397 = vunpack.c.h.b16 %v292
    %v398 = vunpack.c.l.b16 %v293
    %v399 = vunpack.c.h.b16 %v293
    %v400 = vunpack.c.l.b16 %v294
    %v401 = vunpack.c.h.b16 %v294
    %v402 = vunpack.c.l.b16 %v295
    %v403 = vunpack.c.h.b16 %v295
    %v404 = vpack.c.b16 %v342, %v340
    %v405 = vpack.c.b16 %v343, %v341
    %v406 = vpack.c.b16 %v346, %v344
    %v407 = vpack.c.b16 %v347, %v345
    %v408 = vpack.c.b16 %v350, %v348
    %v409 = vpack.c.b16 %v351, %v349
    %v410 = vpack.c.b16 %v354, %v352
    %v411 = vpack.c.b16 %v355, %v353
    %v412 = vpack.c.b16 %v358, %v356
    %v413 = vpack.c.b16 %v359, %v357
    %v414 = vpack.c.b16 %v362, %v360
    %v415 = vpack.c.b16 %v363, %v361
    %v416 = vpack.c.b16 %v366, %v364
    %v417 = vpack.c.b16 %v367, %v365
    %v418 = vpack.c.b16 %v370, %v368
    %v419 = vpack.c.b16 %v371, %v369
    %v420 = vpack.c.b16 %v374, %v372
    %v421 = vpack.c.b16 %v375, %v373
    %v422 = vpack.c.b16 %v378, %v376
    %v423 = vpack.c.b16 %v379, %v377
    %v424 = vpack.c.b16 %v382, %v380
    %v425 = vpack.c.b16 %v383, %v381
    %v426 = vpack.c.b16 %v386, %v384
    %v427 = vpack.c.b16 %v387, %v385
    %v428 = vpack.c.b16 %v390, %v388
    %v429 = vpack.c.b16 %v391, %v389
    %v430 = vpack.c.b16 %v394, %v392
    %v431 = vpack.c.b16 %v395, %v393
    %v432 = vpack.c.b16 %v398, %v396
    %v433 = vpack.c.b16 %v399, %v397
    %v434 = vpack.c.b16 %v402, %v400
    %v435 = vpack.c.b16 %v403, %v401
    %468 = vmatprep.subr.bf16.mxu0 %v419
    %469 = vmatpush1.bf16.msra.mxu0 %v418
    %470 = vmatprep.subr.bf16.mxu0 %v417
    %471 = vmatpush1.bf16.msra.mxu0 %v416
    %472 = vmatprep.subr.bf16.mxu0 %v415
    %473 = vmatpush1.bf16.msra.mxu0 %v414
    %474 = vmatprep.subr.bf16.mxu0 %v413
    %475 = vmatpush1.bf16.msra.mxu0 %v412
    %476 = vmatprep.subr.bf16.mxu0 %v411
    %477 = vmatpush1.bf16.msra.mxu0 %v410
    %478 = vmatprep.subr.bf16.mxu0 %v409
    %479 = vmatpush1.bf16.msra.mxu0 %v408
    %480 = vmatprep.subr.bf16.mxu0 %v407
    %481 = vmatpush1.bf16.msra.mxu0 %v406
    %482 = vmatprep.subr.bf16.mxu0 %v405
    %483 = vmatpush1.bf16.msra.mxu0 %v404
    %484 = vmatprep.subr.bf16.mxu0 %v435
    %485 = vmatpush2.bf16.msra.mxu0 %v434
    %486 = vmatprep.subr.bf16.mxu0 %v433
    %487 = vmatpush2.bf16.msra.mxu0 %v432
    %488 = vmatprep.subr.bf16.mxu0 %v431
    %489 = vmatpush2.bf16.msra.mxu0 %v430
    %490 = vmatprep.subr.bf16.mxu0 %v429
    %491 = vmatpush2.bf16.msra.mxu0 %v428
    %492 = vmatprep.subr.bf16.mxu0 %v427
    %493 = vmatpush2.bf16.msra.mxu0 %v426
    %494 = vmatprep.subr.bf16.mxu0 %v425
    %495 = vmatpush2.bf16.msra.mxu0 %v424
    %496 = vmatprep.subr.bf16.mxu0 %v423
    %497 = vmatpush2.bf16.msra.mxu0 %v422
    %498 = vmatprep.subr.bf16.mxu0 %v421
    %499 = vmatpush2.bf16.msra.mxu0 %v420
    %500 = vmatprep.mubr.bf16.mxu0 %v263
    %501 = vmatmul.mubr.bf16.gmra.mxu0 %v262
    %v502 = vpop.f32.mrf.mxu0
    %v503 = vadd.f32 %v301, %v502
    %v504 = vpop.f32.mrf.mxu0
    %v505 = vadd.f32 %v305, %v504
    %v506 = vpop.f32.mrf.mxu0
    %v507 = vpop.f32.mrf.mxu0
    %508 = vdwg.mxu0
    %v509 = vmul.f32 %v503, 0.2
    %v510 = vmul.f32 %v505, 0.2
    %v511 = vmax.f32 %v503, %v509
    %v512 = vmax.f32 %v505, %v510
    %v513 = vpack.c.bf16 %v511, %v511
    %v514 = vpack.c.bf16 %v512, %v512
    %v515 = vld [vmem:[#allocation7] sm:$0xff]
    %v516 = vld [vmem:[#allocation7 + $0x8] sm:$0xff]
    %v517 = vld [vmem:[#allocation7 + $0x10] sm:$0xff]
    %v518 = vld [vmem:[#allocation7 + $0x18] sm:$0xff]
    %v519 = vld [vmem:[#allocation7 + $0x20] sm:$0xff]
    %v520 = vld [vmem:[#allocation7 + $0x28] sm:$0xff]
    %v521 = vld [vmem:[#allocation7 + $0x30] sm:$0xff]
    %v522 = vld [vmem:[#allocation7 + $0x38] sm:$0xff]
    %v523 = vld [vmem:[#allocation7 + $0x40] sm:$0xff]
    %v524 = vld [vmem:[#allocation7 + $0x48] sm:$0xff]
    %v525 = vld [vmem:[#allocation7 + $0x50] sm:$0xff]
    %v526 = vld [vmem:[#allocation7 + $0x58] sm:$0xff]
    %v527 = vld [vmem:[#allocation7 + $0x60] sm:$0xff]
    %v528 = vld [vmem:[#allocation7 + $0x68] sm:$0xff]
    %v529 = vld [vmem:[#allocation7 + $0x70] sm:$0xff]
    %v530 = vld [vmem:[#allocation7 + $0x78] sm:$0xff]
    %v531 = vld [vmem:[#allocation7 + $0x80] sm:$0xff]
    %v532 = vld [vmem:[#allocation7 + $0x88] sm:$0xff]
    %v533 = vld [vmem:[#allocation7 + $0x90] sm:$0xff]
    %v534 = vld [vmem:[#allocation7 + $0x98] sm:$0xff]
    %v535 = vld [vmem:[#allocation7 + $0xa0] sm:$0xff]
    %v536 = vld [vmem:[#allocation7 + $0xa8] sm:$0xff]
    %v537 = vld [vmem:[#allocation7 + $0xb0] sm:$0xff]
    %v538 = vld [vmem:[#allocation7 + $0xb8] sm:$0xff]
    %v539 = vld [vmem:[#allocation7 + $0xc0] sm:$0xff]
    %v540 = vld [vmem:[#allocation7 + $0xc8] sm:$0xff]
    %v541 = vld [vmem:[#allocation7 + $0xd0] sm:$0xff]
    %v542 = vld [vmem:[#allocation7 + $0xd8] sm:$0xff]
    %v543 = vld [vmem:[#allocation7 + $0xe0] sm:$0xff]
    %v544 = vld [vmem:[#allocation7 + $0xe8] sm:$0xff]
    %v545 = vld [vmem:[#allocation7 + $0xf0] sm:$0xff]
    %v546 = vld [vmem:[#allocation7 + $0xf8] sm:$0xff]
    %v547 = vld [vmem:[%s6] sm:$0x3]
    %v549 = vlaneseq
    %v550 = vshrl.u32 %v549, 7
    %v551 = vsub.s32 0, %v550
    %v552 = vrot.slane %v547, %v551
    %v553 = vlaneseq
    %v554 = vshrl.u32 %v553, 7
    %v555 = vsub.s32 1, %v554
    %v556 = vrot.slane %v547, %v555
    %v591 = vunpack.c.l.b16 %v515
    %v592 = vunpack.c.h.b16 %v515
    %v593 = vunpack.c.l.b16 %v516
    %v594 = vunpack.c.h.b16 %v516
    %v595 = vunpack.c.l.b16 %v517
    %v596 = vunpack.c.h.b16 %v517
    %v597 = vunpack.c.l.b16 %v518
    %v598 = vunpack.c.h.b16 %v518
    %v599 = vunpack.c.l.b16 %v519
    %v600 = vunpack.c.h.b16 %v519
    %v601 = vunpack.c.l.b16 %v520
    %v602 = vunpack.c.h.b16 %v520
    %v603 = vunpack.c.l.b16 %v521
    %v604 = vunpack.c.h.b16 %v521
    %v605 = vunpack.c.l.b16 %v522
    %v606 = vunpack.c.h.b16 %v522
    %v607 = vunpack.c.l.b16 %v523
    %v608 = vunpack.c.h.b16 %v523
    %v609 = vunpack.c.l.b16 %v524
    %v610 = vunpack.c.h.b16 %v524
    %v611 = vunpack.c.l.b16 %v525
    %v612 = vunpack.c.h.b16 %v525
    %v613 = vunpack.c.l.b16 %v526
    %v614 = vunpack.c.h.b16 %v526
    %v615 = vunpack.c.l.b16 %v527
    %v616 = vunpack.c.h.b16 %v527
    %v617 = vunpack.c.l.b16 %v528
    %v618 = vunpack.c.h.b16 %v528
    %v619 = vunpack.c.l.b16 %v529
    %v620 = vunpack.c.h.b16 %v529
    %v621 = vunpack.c.l.b16 %v530
    %v622 = vunpack.c.h.b16 %v530
    %v623 = vunpack.c.l.b16 %v531
    %v624 = vunpack.c.h.b16 %v531
    %v625 = vunpack.c.l.b16 %v532
    %v626 = vunpack.c.h.b16 %v532
    %v627 = vunpack.c.l.b16 %v533
    %v628 = vunpack.c.h.b16 %v533
    %v629 = vunpack.c.l.b16 %v534
    %v630 = vunpack.c.h.b16 %v534
    %v631 = vunpack.c.l.b16 %v535
    %v632 = vunpack.c.h.b16 %v535
    %v633 = vunpack.c.l.b16 %v536
    %v634 = vunpack.c.h.b16 %v536
    %v635 = vunpack.c.l.b16 %v537
    %v636 = vunpack.c.h.b16 %v537
    %v637 = vunpack.c.l.b16 %v538
    %v638 = vunpack.c.h.b16 %v538
    %v639 = vunpack.c.l.b16 %v539
    %v640 = vunpack.c.h.b16 %v539
    %v641 = vunpack.c.l.b16 %v540
    %v642 = vunpack.c.h.b16 %v540
    %v643 = vunpack.c.l.b16 %v541
    %v644 = vunpack.c.h.b16 %v541
    %v645 = vunpack.c.l.b16 %v542
    %v646 = vunpack.c.h.b16 %v542
    %v647 = vunpack.c.l.b16 %v543
    %v648 = vunpack.c.h.b16 %v543
    %v649 = vunpack.c.l.b16 %v544
    %v650 = vunpack.c.h.b16 %v544
    %v651 = vunpack.c.l.b16 %v545
    %v652 = vunpack.c.h.b16 %v545
    %v653 = vunpack.c.l.b16 %v546
    %v654 = vunpack.c.h.b16 %v546
    %v655 = vpack.c.b16 %v593, %v591
    %v656 = vpack.c.b16 %v594, %v592
    %v657 = vpack.c.b16 %v597, %v595
    %v658 = vpack.c.b16 %v598, %v596
    %v659 = vpack.c.b16 %v601, %v599
    %v660 = vpack.c.b16 %v602, %v600
    %v661 = vpack.c.b16 %v605, %v603
    %v662 = vpack.c.b16 %v606, %v604
    %v663 = vpack.c.b16 %v609, %v607
    %v664 = vpack.c.b16 %v610, %v608
    %v665 = vpack.c.b16 %v613, %v611
    %v666 = vpack.c.b16 %v614, %v612
    %v667 = vpack.c.b16 %v617, %v615
    %v668 = vpack.c.b16 %v618, %v616
    %v669 = vpack.c.b16 %v621, %v619
    %v670 = vpack.c.b16 %v622, %v620
    %v671 = vpack.c.b16 %v625, %v623
    %v672 = vpack.c.b16 %v626, %v624
    %v673 = vpack.c.b16 %v629, %v627
    %v674 = vpack.c.b16 %v630, %v628
    %v675 = vpack.c.b16 %v633, %v631
    %v676 = vpack.c.b16 %v634, %v632
    %v677 = vpack.c.b16 %v637, %v635
    %v678 = vpack.c.b16 %v638, %v636
    %v679 = vpack.c.b16 %v641, %v639
    %v680 = vpack.c.b16 %v642, %v640
    %v681 = vpack.c.b16 %v645, %v643
    %v682 = vpack.c.b16 %v646, %v644
    %v683 = vpack.c.b16 %v649, %v647
    %v684 = vpack.c.b16 %v650, %v648
    %v685 = vpack.c.b16 %v653, %v651
    %v686 = vpack.c.b16 %v654, %v652
    %719 = vmatprep.subr.bf16.mxu0 %v670
    %720 = vmatpush1.bf16.msra.mxu0 %v669
    %721 = vmatprep.subr.bf16.mxu0 %v668
    %722 = vmatpush1.bf16.msra.mxu0 %v667
    %723 = vmatprep.subr.bf16.mxu0 %v666
    %724 = vmatpush1.bf16.msra.mxu0 %v665
    %725 = vmatprep.subr.bf16.mxu0 %v664
    %726 = vmatpush1.bf16.msra.mxu0 %v663
    %727 = vmatprep.subr.bf16.mxu0 %v662
    %728 = vmatpush1.bf16.msra.mxu0 %v661
    %729 = vmatprep.subr.bf16.mxu0 %v660
    %730 = vmatpush1.bf16.msra.mxu0 %v659
    %731 = vmatprep.subr.bf16.mxu0 %v658
    %732 = vmatpush1.bf16.msra.mxu0 %v657
    %733 = vmatprep.subr.bf16.mxu0 %v656
    %734 = vmatpush1.bf16.msra.mxu0 %v655
    %735 = vmatprep.subr.bf16.mxu0 %v686
    %736 = vmatpush2.bf16.msra.mxu0 %v685
    %737 = vmatprep.subr.bf16.mxu0 %v684
    %738 = vmatpush2.bf16.msra.mxu0 %v683
    %739 = vmatprep.subr.bf16.mxu0 %v682
    %740 = vmatpush2.bf16.msra.mxu0 %v681
    %741 = vmatprep.subr.bf16.mxu0 %v680
    %742 = vmatpush2.bf16.msra.mxu0 %v679
    %743 = vmatprep.subr.bf16.mxu0 %v678
    %744 = vmatpush2.bf16.msra.mxu0 %v677
    %745 = vmatprep.subr.bf16.mxu0 %v676
    %746 = vmatpush2.bf16.msra.mxu0 %v675
    %747 = vmatprep.subr.bf16.mxu0 %v674
    %748 = vmatpush2.bf16.msra.mxu0 %v673
    %749 = vmatprep.subr.bf16.mxu0 %v672
    %750 = vmatpush2.bf16.msra.mxu0 %v671
    %751 = vmatprep.mubr.bf16.mxu0 %v514
    %752 = vmatmul.mubr.bf16.gmra.mxu0 %v513
    %v753 = vpop.f32.mrf.mxu0
    %v754 = vadd.f32 %v552, %v753
    %v755 = vpop.f32.mrf.mxu0
    %v756 = vadd.f32 %v556, %v755
    %v757 = vpop.f32.mrf.mxu0
    %v758 = vpop.f32.mrf.mxu0
    %759 = vdwg.mxu0
    %v760 = vmul.f32 %v754, 0.2
    %v761 = vmul.f32 %v756, 0.2
    %v762 = vmax.f32 %v754, %v760
    %v763 = vmax.f32 %v756, %v761
    %v764 = vpack.c.bf16 %v762, %v762
    %v765 = vpack.c.bf16 %v763, %v763
    %v766 = vld [vmem:[#allocation8] sm:$0xff]
    %v767 = vld [vmem:[#allocation8 + $0x8] sm:$0xff]
    %v768 = vld [vmem:[#allocation8 + $0x10] sm:$0xff]
    %v769 = vld [vmem:[#allocation8 + $0x18] sm:$0xff]
    %v770 = vld [vmem:[#allocation8 + $0x20] sm:$0xff]
    %v771 = vld [vmem:[#allocation8 + $0x28] sm:$0xff]
    %v772 = vld [vmem:[#allocation8 + $0x30] sm:$0xff]
    %v773 = vld [vmem:[#allocation8 + $0x38] sm:$0xff]
    %v774 = vld [vmem:[#allocation8 + $0x40] sm:$0xff]
    %v775 = vld [vmem:[#allocation8 + $0x48] sm:$0xff]
    %v776 = vld [vmem:[#allocation8 + $0x50] sm:$0xff]
    %v777 = vld [vmem:[#allocation8 + $0x58] sm:$0xff]
    %v778 = vld [vmem:[#allocation8 + $0x60] sm:$0xff]
    %v779 = vld [vmem:[#allocation8 + $0x68] sm:$0xff]
    %v780 = vld [vmem:[#allocation8 + $0x70] sm:$0xff]
    %v781 = vld [vmem:[#allocation8 + $0x78] sm:$0xff]
    %v782 = vld [vmem:[#allocation8 + $0x80] sm:$0xff]
    %v783 = vld [vmem:[#allocation8 + $0x88] sm:$0xff]
    %v784 = vld [vmem:[#allocation8 + $0x90] sm:$0xff]
    %v785 = vld [vmem:[#allocation8 + $0x98] sm:$0xff]
    %v786 = vld [vmem:[#allocation8 + $0xa0] sm:$0xff]
    %v787 = vld [vmem:[#allocation8 + $0xa8] sm:$0xff]
    %v788 = vld [vmem:[#allocation8 + $0xb0] sm:$0xff]
    %v789 = vld [vmem:[#allocation8 + $0xb8] sm:$0xff]
    %v790 = vld [vmem:[#allocation8 + $0xc0] sm:$0xff]
    %v791 = vld [vmem:[#allocation8 + $0xc8] sm:$0xff]
    %v792 = vld [vmem:[#allocation8 + $0xd0] sm:$0xff]
    %v793 = vld [vmem:[#allocation8 + $0xd8] sm:$0xff]
    %v794 = vld [vmem:[#allocation8 + $0xe0] sm:$0xff]
    %v795 = vld [vmem:[#allocation8 + $0xe8] sm:$0xff]
    %v796 = vld [vmem:[#allocation8 + $0xf0] sm:$0xff]
    %v797 = vld [vmem:[#allocation8 + $0xf8] sm:$0xff]
    %v798 = vld [vmem:[%s8] sm:$0x3]
    %v800 = vlaneseq
    %v801 = vshrl.u32 %v800, 7
    %v802 = vsub.s32 0, %v801
    %v803 = vrot.slane %v798, %v802
    %v804 = vlaneseq
    %v805 = vshrl.u32 %v804, 7
    %v806 = vsub.s32 1, %v805
    %v807 = vrot.slane %v798, %v806
    %v842 = vunpack.c.l.b16 %v766
    %v843 = vunpack.c.h.b16 %v766
    %v844 = vunpack.c.l.b16 %v767
    %v845 = vunpack.c.h.b16 %v767
    %v846 = vunpack.c.l.b16 %v768
    %v847 = vunpack.c.h.b16 %v768
    %v848 = vunpack.c.l.b16 %v769
    %v849 = vunpack.c.h.b16 %v769
    %v850 = vunpack.c.l.b16 %v770
    %v851 = vunpack.c.h.b16 %v770
    %v852 = vunpack.c.l.b16 %v771
    %v853 = vunpack.c.h.b16 %v771
    %v854 = vunpack.c.l.b16 %v772
    %v855 = vunpack.c.h.b16 %v772
    %v856 = vunpack.c.l.b16 %v773
    %v857 = vunpack.c.h.b16 %v773
    %v858 = vunpack.c.l.b16 %v774
    %v859 = vunpack.c.h.b16 %v774
    %v860 = vunpack.c.l.b16 %v775
    %v861 = vunpack.c.h.b16 %v775
    %v862 = vunpack.c.l.b16 %v776
    %v863 = vunpack.c.h.b16 %v776
    %v864 = vunpack.c.l.b16 %v777
    %v865 = vunpack.c.h.b16 %v777
    %v866 = vunpack.c.l.b16 %v778
    %v867 = vunpack.c.h.b16 %v778
    %v868 = vunpack.c.l.b16 %v779
    %v869 = vunpack.c.h.b16 %v779
    %v870 = vunpack.c.l.b16 %v780
    %v871 = vunpack.c.h.b16 %v780
    %v872 = vunpack.c.l.b16 %v781
    %v873 = vunpack.c.h.b16 %v781
    %v874 = vunpack.c.l.b16 %v782
    %v875 = vunpack.c.h.b16 %v782
    %v876 = vunpack.c.l.b16 %v783
    %v877 = vunpack.c.h.b16 %v783
    %v878 = vunpack.c.l.b16 %v784
    %v879 = vunpack.c.h.b16 %v784
    %v880 = vunpack.c.l.b16 %v785
    %v881 = vunpack.c.h.b16 %v785
    %v882 = vunpack.c.l.b16 %v786
    %v883 = vunpack.c.h.b16 %v786
    %v884 = vunpack.c.l.b16 %v787
    %v885 = vunpack.c.h.b16 %v787
    %v886 = vunpack.c.l.b16 %v788
    %v887 = vunpack.c.h.b16 %v788
    %v888 = vunpack.c.l.b16 %v789
    %v889 = vunpack.c.h.b16 %v789
    %v890 = vunpack.c.l.b16 %v790
    %v891 = vunpack.c.h.b16 %v790
    %v892 = vunpack.c.l.b16 %v791
    %v893 = vunpack.c.h.b16 %v791
    %v894 = vunpack.c.l.b16 %v792
    %v895 = vunpack.c.h.b16 %v792
    %v896 = vunpack.c.l.b16 %v793
    %v897 = vunpack.c.h.b16 %v793
    %v898 = vunpack.c.l.b16 %v794
    %v899 = vunpack.c.h.b16 %v794
    %v900 = vunpack.c.l.b16 %v795
    %v901 = vunpack.c.h.b16 %v795
    %v902 = vunpack.c.l.b16 %v796
    %v903 = vunpack.c.h.b16 %v796
    %v904 = vunpack.c.l.b16 %v797
    %v905 = vunpack.c.h.b16 %v797
    %v906 = vpack.c.b16 %v844, %v842
    %v907 = vpack.c.b16 %v845, %v843
    %v908 = vpack.c.b16 %v848, %v846
    %v909 = vpack.c.b16 %v849, %v847
    %v910 = vpack.c.b16 %v852, %v850
    %v911 = vpack.c.b16 %v853, %v851
    %v912 = vpack.c.b16 %v856, %v854
    %v913 = vpack.c.b16 %v857, %v855
    %v914 = vpack.c.b16 %v860, %v858
    %v915 = vpack.c.b16 %v861, %v859
    %v916 = vpack.c.b16 %v864, %v862
    %v917 = vpack.c.b16 %v865, %v863
    %v918 = vpack.c.b16 %v868, %v866
    %v919 = vpack.c.b16 %v869, %v867
    %v920 = vpack.c.b16 %v872, %v870
    %v921 = vpack.c.b16 %v873, %v871
    %v922 = vpack.c.b16 %v876, %v874
    %v923 = vpack.c.b16 %v877, %v875
    %v924 = vpack.c.b16 %v880, %v878
    %v925 = vpack.c.b16 %v881, %v879
    %v926 = vpack.c.b16 %v884, %v882
    %v927 = vpack.c.b16 %v885, %v883
    %v928 = vpack.c.b16 %v888, %v886
    %v929 = vpack.c.b16 %v889, %v887
    %v930 = vpack.c.b16 %v892, %v890
    %v931 = vpack.c.b16 %v893, %v891
    %v932 = vpack.c.b16 %v896, %v894
    %v933 = vpack.c.b16 %v897, %v895
    %v934 = vpack.c.b16 %v900, %v898
    %v935 = vpack.c.b16 %v901, %v899
    %v936 = vpack.c.b16 %v904, %v902
    %v937 = vpack.c.b16 %v905, %v903
    %970 = vmatprep.subr.bf16.mxu0 %v921
    %971 = vmatpush1.bf16.msra.mxu0 %v920
    %972 = vmatprep.subr.bf16.mxu0 %v919
    %973 = vmatpush1.bf16.msra.mxu0 %v918
    %974 = vmatprep.subr.bf16.mxu0 %v917
    %975 = vmatpush1.bf16.msra.mxu0 %v916
    %976 = vmatprep.subr.bf16.mxu0 %v915
    %977 = vmatpush1.bf16.msra.mxu0 %v914
    %978 = vmatprep.subr.bf16.mxu0 %v913
    %979 = vmatpush1.bf16.msra.mxu0 %v912
    %980 = vmatprep.subr.bf16.mxu0 %v911
    %981 = vmatpush1.bf16.msra.mxu0 %v910
    %982 = vmatprep.subr.bf16.mxu0 %v909
    %983 = vmatpush1.bf16.msra.mxu0 %v908
    %984 = vmatprep.subr.bf16.mxu0 %v907
    %985 = vmatpush1.bf16.msra.mxu0 %v906
    %986 = vmatprep.subr.bf16.mxu0 %v937
    %987 = vmatpush2.bf16.msra.mxu0 %v936
    %988 = vmatprep.subr.bf16.mxu0 %v935
    %989 = vmatpush2.bf16.msra.mxu0 %v934
    %990 = vmatprep.subr.bf16.mxu0 %v933
    %991 = vmatpush2.bf16.msra.mxu0 %v932
    %992 = vmatprep.subr.bf16.mxu0 %v931
    %993 = vmatpush2.bf16.msra.mxu0 %v930
    %994 = vmatprep.subr.bf16.mxu0 %v929
    %995 = vmatpush2.bf16.msra.mxu0 %v928
    %996 = vmatprep.subr.bf16.mxu0 %v927
    %997 = vmatpush2.bf16.msra.mxu0 %v926
    %998 = vmatprep.subr.bf16.mxu0 %v925
    %999 = vmatpush2.bf16.msra.mxu0 %v924
    %1000 = vmatprep.subr.bf16.mxu0 %v923
    %1001 = vmatpush2.bf16.msra.mxu0 %v922
    %1002 = vmatprep.mubr.bf16.mxu0 %v765
    %1003 = vmatmul.mubr.bf16.gmra.mxu0 %v764
    %v1004 = vpop.f32.mrf.mxu0
    %v1005 = vadd.f32 %v803, %v1004
    %v1006 = vpop.f32.mrf.mxu0
    %v1007 = vadd.f32 %v807, %v1006
    %v1008 = vpop.f32.mrf.mxu0
    %v1009 = vpop.f32.mrf.mxu0
    %1010 = vdwg.mxu0
    %v1011 = vmul.f32 %v1005, 0.2
    %v1012 = vmul.f32 %v1007, 0.2
    %v1013 = vmax.f32 %v1005, %v1011
    %v1014 = vmax.f32 %v1007, %v1012
    %v1015 = vpack.c.bf16 %v1013, %v1013
    %v1016 = vpack.c.bf16 %v1014, %v1014
    %v1017 = vld [vmem:[#allocation10] sm:$0xf]
    %v1018 = vld [vmem:[#allocation10 + $0x4] sm:$0xf]
    %v1019 = vld [vmem:[#allocation10 + $0x8] sm:$0xf]
    %v1020 = vld [vmem:[#allocation10 + $0xc] sm:$0xf]
    %v1021 = vld [vmem:[#allocation10 + $0x10] sm:$0xf]
    %v1022 = vld [vmem:[#allocation10 + $0x14] sm:$0xf]
    %v1023 = vld [vmem:[#allocation10 + $0x18] sm:$0xf]
    %v1024 = vld [vmem:[#allocation10 + $0x1c] sm:$0xf]
    %v1025 = vld [vmem:[#allocation10 + $0x20] sm:$0xf]
    %v1026 = vld [vmem:[#allocation10 + $0x24] sm:$0xf]
    %v1027 = vld [vmem:[#allocation10 + $0x28] sm:$0xf]
    %v1028 = vld [vmem:[#allocation10 + $0x2c] sm:$0xf]
    %v1029 = vld [vmem:[#allocation10 + $0x30] sm:$0xf]
    %v1030 = vld [vmem:[#allocation10 + $0x34] sm:$0xf]
    %v1031 = vld [vmem:[#allocation10 + $0x38] sm:$0xf]
    %v1032 = vld [vmem:[#allocation10 + $0x3c] sm:$0xf]
    %v1033 = vld [vmem:[#allocation10 + $0x40] sm:$0xf]
    %v1034 = vld [vmem:[#allocation10 + $0x44] sm:$0xf]
    %v1035 = vld [vmem:[#allocation10 + $0x48] sm:$0xf]
    %v1036 = vld [vmem:[#allocation10 + $0x4c] sm:$0xf]
    %v1037 = vld [vmem:[#allocation10 + $0x50] sm:$0xf]
    %v1038 = vld [vmem:[#allocation10 + $0x54] sm:$0xf]
    %v1039 = vld [vmem:[#allocation10 + $0x58] sm:$0xf]
    %v1040 = vld [vmem:[#allocation10 + $0x5c] sm:$0xf]
    %v1041 = vld [vmem:[#allocation10 + $0x60] sm:$0xf]
    %v1042 = vld [vmem:[#allocation10 + $0x64] sm:$0xf]
    %v1043 = vld [vmem:[#allocation10 + $0x68] sm:$0xf]
    %v1044 = vld [vmem:[#allocation10 + $0x6c] sm:$0xf]
    %v1045 = vld [vmem:[#allocation10 + $0x70] sm:$0xf]
    %v1046 = vld [vmem:[#allocation10 + $0x74] sm:$0xf]
    %v1047 = vld [vmem:[#allocation10 + $0x78] sm:$0xf]
    %v1048 = vld [vmem:[#allocation10 + $0x7c] sm:$0xf]
    %v1049 = vld [vmem:[%s10] sm:$0x1]
    %v1051 = vlaneseq
    %v1052 = vshrl.u32 %v1051, 7
    %v1053 = vsub.s32 0, %v1052
    %v1054 = vrot.slane %v1049, %v1053
    %v1088 = vunpack.c.l.b16 %v1017
    %v1089 = vunpack.c.l.b16 %v1018
    %v1090 = vunpack.c.l.b16 %v1019
    %v1091 = vunpack.c.l.b16 %v1020
    %v1092 = vunpack.c.l.b16 %v1021
    %v1093 = vunpack.c.l.b16 %v1022
    %v1094 = vunpack.c.l.b16 %v1023
    %v1095 = vunpack.c.l.b16 %v1024
    %v1096 = vunpack.c.l.b16 %v1025
    %v1097 = vunpack.c.l.b16 %v1026
    %v1098 = vunpack.c.l.b16 %v1027
    %v1099 = vunpack.c.l.b16 %v1028
    %v1100 = vunpack.c.l.b16 %v1029
    %v1101 = vunpack.c.l.b16 %v1030
    %v1102 = vunpack.c.l.b16 %v1031
    %v1103 = vunpack.c.l.b16 %v1032
    %v1104 = vunpack.c.l.b16 %v1033
    %v1105 = vunpack.c.l.b16 %v1034
    %v1106 = vunpack.c.l.b16 %v1035
    %v1107 = vunpack.c.l.b16 %v1036
    %v1108 = vunpack.c.l.b16 %v1037
    %v1109 = vunpack.c.l.b16 %v1038
    %v1110 = vunpack.c.l.b16 %v1039
    %v1111 = vunpack.c.l.b16 %v1040
    %v1112 = vunpack.c.l.b16 %v1041
    %v1113 = vunpack.c.l.b16 %v1042
    %v1114 = vunpack.c.l.b16 %v1043
    %v1115 = vunpack.c.l.b16 %v1044
    %v1116 = vunpack.c.l.b16 %v1045
    %v1117 = vunpack.c.l.b16 %v1046
    %v1118 = vunpack.c.l.b16 %v1047
    %v1119 = vunpack.c.l.b16 %v1048
    %v1120 = vpack.c.b16 %v1089, %v1088
    %v1121 = vpack.c.b16 %v1091, %v1090
    %v1122 = vpack.c.b16 %v1093, %v1092
    %v1123 = vpack.c.b16 %v1095, %v1094
    %v1124 = vpack.c.b16 %v1097, %v1096
    %v1125 = vpack.c.b16 %v1099, %v1098
    %v1126 = vpack.c.b16 %v1101, %v1100
    %v1127 = vpack.c.b16 %v1103, %v1102
    %v1128 = vpack.c.b16 %v1105, %v1104
    %v1129 = vpack.c.b16 %v1107, %v1106
    %v1130 = vpack.c.b16 %v1109, %v1108
    %v1131 = vpack.c.b16 %v1111, %v1110
    %v1132 = vpack.c.b16 %v1113, %v1112
    %v1133 = vpack.c.b16 %v1115, %v1114
    %v1134 = vpack.c.b16 %v1117, %v1116
    %v1135 = vpack.c.b16 %v1119, %v1118
    %1152 = vmatprep.subr.bf16.mxu0 0
    %1153 = vmatpush1.bf16.msra.mxu0 %v1127
    %1154 = vmatprep.subr.bf16.mxu0 0
    %1155 = vmatpush1.bf16.msra.mxu0 %v1126
    %1156 = vmatprep.subr.bf16.mxu0 0
    %1157 = vmatpush1.bf16.msra.mxu0 %v1125
    %1158 = vmatprep.subr.bf16.mxu0 0
    %1159 = vmatpush1.bf16.msra.mxu0 %v1124
    %1160 = vmatprep.subr.bf16.mxu0 0
    %1161 = vmatpush1.bf16.msra.mxu0 %v1123
    %1162 = vmatprep.subr.bf16.mxu0 0
    %1163 = vmatpush1.bf16.msra.mxu0 %v1122
    %1164 = vmatprep.subr.bf16.mxu0 0
    %1165 = vmatpush1.bf16.msra.mxu0 %v1121
    %1166 = vmatprep.subr.bf16.mxu0 0
    %1167 = vmatpush1.bf16.msra.mxu0 %v1120
    %1168 = vmatprep.subr.bf16.mxu0 0
    %1169 = vmatpush2.bf16.msra.mxu0 %v1135
    %1170 = vmatprep.subr.bf16.mxu0 0
    %1171 = vmatpush2.bf16.msra.mxu0 %v1134
    %1172 = vmatprep.subr.bf16.mxu0 0
    %1173 = vmatpush2.bf16.msra.mxu0 %v1133
    %1174 = vmatprep.subr.bf16.mxu0 0
    %1175 = vmatpush2.bf16.msra.mxu0 %v1132
    %1176 = vmatprep.subr.bf16.mxu0 0
    %1177 = vmatpush2.bf16.msra.mxu0 %v1131
    %1178 = vmatprep.subr.bf16.mxu0 0
    %1179 = vmatpush2.bf16.msra.mxu0 %v1130
    %1180 = vmatprep.subr.bf16.mxu0 0
    %1181 = vmatpush2.bf16.msra.mxu0 %v1129
    %1182 = vmatprep.subr.bf16.mxu0 0
    %1183 = vmatpush2.bf16.msra.mxu0 %v1128
    %1184 = vmatprep.mubr.bf16.mxu0 %v1016
    %1185 = vmatmul.mubr.bf16.gmra.mxu0 %v1015
    %v1186 = vpop.f32.mrf.mxu0
    %v1187 = vadd.f32 %v1054, %v1186
    %v1188 = vpop.f32.mrf.mxu0
    %v1189 = vpop.f32.mrf.mxu0
    %v1190 = vpop.f32.mrf.mxu0
    %1191 = vdwg.mxu0
    %1192 = vst [vmem:[#allocation11] sm:$0xff] %v1187
    // Predicated region
    $region66: #{emoca_recognition_forward.1} parent=1 // pred_check
      _
    $region67: #{emoca_recognition_forward.1} parent=1 // pred_check_branch
      %1194 = sbr.rel (0) target = $region69
    $region68: #{emoca_recognition_forward.1} parent=1 // pred_region
      %s1196 = ssub.s32 128, 128
      %1197 = vsyncadd [#allocation4], %s1196
      %s1199 = sshll.u32 [#allocation11], 4
      %s1200 = int_to_ptr.vmem [resolvable:$true] %s1199
      %1202 = dma.vmem_to_hbm [thread:$0]  %s1200, 128, %s11, [#allocation4]
    $region69: #{emoca_recognition_forward.1} parent=1 // pred_fallthru
      _
    // Predicated region
    $region70: #{emoca_recognition_forward.1} parent=1 // pred_check
      _
    $region71: #{emoca_recognition_forward.1} parent=1 // pred_check_branch
      %1204 = sbr.rel (0) target = $region73
    $region72: #{emoca_recognition_forward.1} parent=1 // pred_region
      %1205 = dma.done [#allocation4], 128
    $region73: #{emoca_recognition_forward.1} parent=1 // pred_fallthru
      _
    %1206 = vsyncpa [#allocation3], 1
    %1207 = vsyncpa [#allocation6], 1
    %1208 = vsyncpa [#allocation9], 1
    %1209 = vsyncpa [#allocation4], 1

</llo_original>
